<compile_context>
chip_gen: v7x
topology: tpu7x:2x2x1
jax: 0.10.0
libtpu: 0.0.40
codegen_flags: <defaults>
</compile_context>

<pallas_src>
import functools
import math

import jax
import jax.numpy as jnp
from jax.experimental import pallas as pl
from jax.experimental.pallas import tpu as pltpu

GIN_EPS = 0.0     # GINConv eps parameter (train_eps=False, eps=0.0)
BN_EPS = 1e-5     # nn.BatchNorm1d default eps


def _round_up(v, m):
    return (v + m - 1) // m * m


def _pad_to(a, shape):
    return jnp.pad(a, [(0, t - s) for s, t in zip(a.shape, shape)])


# --------------------------------------------------------------- kernel 1 --
def _agg_lin1_kernel(xr_ref, xc_ref, adj_ref, w1_ref, h_ref, stats_ref,
                     acc_ref):
    """agg = A_r @ x (tiled over K); h = (x + agg) @ W1; BN partial sums."""
    k = pl.program_id(2)

    @pl.when(k == 0)
    def _():
        acc_ref[...] = jnp.zeros_like(acc_ref)

    # Scatter-add over relation-r edges == dense matmul, one (TM, TK) tile.
    acc_ref[...] += jnp.dot(adj_ref[0], xc_ref[...],
                            preferred_element_type=jnp.float32)

    @pl.when(k == pl.num_programs(2) - 1)
    def _():
        x_self = xr_ref[...].astype(jnp.float32)
        if GIN_EPS != 0.0:                    # trace-time branch: no *1.0 op
            x_upd = (1.0 + GIN_EPS) * x_self + acc_ref[...]
        else:
            x_upd = x_self + acc_ref[...]
        # First Linear of the GIN MLP.  b1 is omitted on purpose: the
        # BatchNorm mean subtraction cancels it exactly.
        h = jnp.dot(x_upd.astype(jnp.bfloat16), w1_ref[0],
                    preferred_element_type=jnp.float32)
        h_ref[0] = h
        # Per-row-tile partial sums so the BatchNorm statistics stay global
        # over all N nodes (two-pass BN): row 0 = sum(h), row 1 = sum(h*h).
        fo = h.shape[1]
        row = jax.lax.broadcasted_iota(jnp.int32, (8, fo), 0)
        s1 = jnp.broadcast_to(jnp.sum(h, axis=0, keepdims=True), (8, fo))
        s2 = jnp.broadcast_to(jnp.sum(h * h, axis=0, keepdims=True), (8, fo))
        stats_ref[0] = jnp.where(row == 0, s1, jnp.where(row == 1, s2, 0.0))


# --------------------------------------------------------------- kernel 2 --
def _bn_lin2_kernel(h_ref, x_ref, wsl_ref, bsl_ref, scale_ref, shift_ref,
                    w2_ref, b2_ref, out_ref, acc_ref):
    """Folded BN + ReLU + second Linear; self-loop at r==0; sum over R."""
    r = pl.program_id(1)

    @pl.when(r == 0)
    def _():
        acc_ref[...] = (jnp.dot(x_ref[...], wsl_ref[...],
                                preferred_element_type=jnp.float32)
                        + bsl_ref[...])

    h = h_ref[0] * scale_ref[0] + shift_ref[0]      # folded BatchNorm affine
    h = jnp.maximum(h, 0.0)                         # ReLU
    acc_ref[...] += (jnp.dot(h.astype(jnp.bfloat16), w2_ref[0],
                             preferred_element_type=jnp.float32)
                     + b2_ref[0])

    @pl.when(r == pl.num_programs(1) - 1)
    def _():
        out_ref[...] = acc_ref[...]                 # single lane-dense store


# ---------------------------------------------------------------- wrapper --
@functools.partial(jax.jit, static_argnames=("tile_m", "tile_k"))
def rgin_conv(x, adj, params, *, tile_m=256, tile_k=256):
    """x: (N, F_in) float, adj: (R, N, N) dense per-relation adjacency."""
    N, F_in = x.shape
    R = adj.shape[0]
    F_out = params["w_sl"].shape[1]

    assert tile_m % 128 == 0 and tile_k % 128 == 0
    n128 = _round_up(N, 128)
    tm = min(tile_m, n128)                    # cap tiles for tiny graphs
    tk = min(tile_k, n128)
    n_pad = _round_up(N, math.lcm(tm, tk))
    fi = _round_up(F_in, 128)                 # 128-lane-dense features
    fo = _round_up(F_out, 128)
    n_i = n_pad // tm
    n_k = n_pad // tk

    bf16, f32 = jnp.bfloat16, jnp.float32

    # Pad + cast once (bf16 MXU operands, f32 biases / BN params).
    x_p = _pad_to(x, (n_pad, fi)).astype(bf16)
    adj_p = _pad_to(adj, (R, n_pad, n_pad)).astype(bf16)
    wsl_p = _pad_to(params["w_sl"], (fi, fo)).astype(bf16)
    bsl_p = _pad_to(params["b_sl"].reshape(1, F_out), (1, fo)).astype(f32)
    w1_p = _pad_to(params["w1"], (R, fi, fo)).astype(bf16)
    w2_p = _pad_to(params["w2"], (R, fo, fo)).astype(bf16)
    b2_p = _pad_to(params["b2"].reshape(R, 1, F_out), (R, 1, fo)).astype(f32)
    gamma_p = _pad_to(params["gamma"], (R, fo)).astype(f32)   # pads with 0
    beta_p = _pad_to(params["beta"], (R, fo)).astype(f32)

    # --- pass 1: tiled aggregation + first Linear + BN partial sums --------
    raw1 = (2 * (tm * fi * 2 + tk * fi * 2 + tm * tk * 2 + fi * fo * 2
                 + tm * fo * 4 + 8 * fo * 4)          # double-buffered tiles
            + tm * fi * 4)                            # f32 scratch
    vmem1 = min(max(2 * raw1 + (2 << 20), 8 << 20), 64 << 20)

    h_pre, stats = pl.pallas_call(
        _agg_lin1_kernel,
        out_shape=(jax.ShapeDtypeStruct((R, n_pad, fo), f32),
                   jax.ShapeDtypeStruct((R, n_i * 8, fo), f32)),
        grid_spec=pltpu.PrefetchScalarGridSpec(
            num_scalar_prefetch=0,
            grid=(R, n_i, n_k),
            in_specs=[
                pl.BlockSpec((tm, fi), lambda r, i, k: (i, 0)),        # x rows
                pl.BlockSpec((tk, fi), lambda r, i, k: (k, 0)),        # x cols
                pl.BlockSpec((1, tm, tk), lambda r, i, k: (r, i, k)),  # adj
                pl.BlockSpec((1, fi, fo), lambda r, i, k: (r, 0, 0)),  # W1[r]
            ],
            out_specs=[
                pl.BlockSpec((1, tm, fo), lambda r, i, k: (r, i, 0)),  # h_pre
                pl.BlockSpec((1, 8, fo), lambda r, i, k: (r, i, 0)),   # stats
            ],
            scratch_shapes=[pltpu.VMEM((tm, fi), f32)],
        ),
        compiler_params=pltpu.CompilerParams(
            dimension_semantics=("parallel", "parallel", "arbitrary"),
            vmem_limit_bytes=int(vmem1)),
    )(x_p, x_p, adj_p, w1_p)

    # --- tiny glue: global BN stats (divide by the TRUE node count N) ------
    stats = stats.reshape(R, n_i, 8, fo)
    s1 = jnp.sum(stats[:, :, 0, :], axis=1)
    s2 = jnp.sum(stats[:, :, 1, :], axis=1)
    mean = s1 / N
    var = jnp.maximum(s2 / N - mean * mean, 0.0)
    scale = gamma_p * jax.lax.rsqrt(var + BN_EPS)     # folded BN affine
    shift = beta_p - mean * scale
    scale = scale.reshape(R, 1, fo)
    shift = shift.reshape(R, 1, fo)

    # --- pass 2: BN-apply + ReLU + second Linear + self-loop + sum over R --
    raw2 = (2 * (tm * fo * 4 + tm * fi * 2 + fi * fo * 2 + fo * 4
                 + 2 * fo * 4 + fo * fo * 2 + fo * 4 + tm * fo * 4)
            + tm * fo * 4)
    vmem2 = min(max(2 * raw2 + (2 << 20), 8 << 20), 64 << 20)

    out_p = pl.pallas_call(
        _bn_lin2_kernel,
        out_shape=jax.ShapeDtypeStruct((n_pad, fo), f32),
        grid_spec=pltpu.PrefetchScalarGridSpec(
            num_scalar_prefetch=0,
            grid=(n_i, R),
            in_specs=[
                pl.BlockSpec((1, tm, fo), lambda i, r: (r, i, 0)),    # h_pre
                pl.BlockSpec((tm, fi), lambda i, r: (i, 0)),          # x rows
                pl.BlockSpec((fi, fo), lambda i, r: (0, 0)),          # W_sl
                pl.BlockSpec((1, fo), lambda i, r: (0, 0)),           # b_sl
                pl.BlockSpec((1, 1, fo), lambda i, r: (r, 0, 0)),     # scale
                pl.BlockSpec((1, 1, fo), lambda i, r: (r, 0, 0)),     # shift
                pl.BlockSpec((1, fo, fo), lambda i, r: (r, 0, 0)),    # W2[r]
                pl.BlockSpec((1, 1, fo), lambda i, r: (r, 0, 0)),     # b2[r]
            ],
            out_specs=pl.BlockSpec((tm, fo), lambda i, r: (i, 0)),
            scratch_shapes=[pltpu.VMEM((tm, fo), f32)],
        ),
        compiler_params=pltpu.CompilerParams(
            dimension_semantics=("parallel", "arbitrary"),
            vmem_limit_bytes=int(vmem2)),
    )(h_pre, x_p, wsl_p, bsl_p, scale, shift, w2_p, b2_p)

    return out_p[:N, :F_out]


# -------------------------------------------------------------- reference --
def _reference(x, adj, params):
    """Pure-JAX reference.  Dot operands are bf16-rounded to mirror the
    kernel's MXU dtype; all accumulation stays in f32.  b1 is included here
    (the kernel drops it — it is exactly cancelled by the BN mean)."""
    bf = lambda a: a.astype(jnp.bfloat16).astype(jnp.float32)
    xb = bf(x)
    out = xb @ bf(params["w_sl"]) + params["b_sl"]
    R = adj.shape[0]
    for r in range(R):
        agg = bf(adj[r]) @ xb
        x_upd = (1.0 + GIN_EPS) * xb + agg
        h = bf(x_upd) @ bf(params["w1"][r]) + params["b1"][r]
        mean = jnp.mean(h, axis=0, keepdims=True)
        var = jnp.mean((h - mean) ** 2, axis=0, keepdims=True)
        h = (h - mean) * jax.lax.rsqrt(var + BN_EPS)
        h = h * params["gamma"][r] + params["beta"][r]
        h = jnp.maximum(h, 0.0)
        h = bf(h) @ bf(params["w2"][r]) + params["b2"][r]
        out = out + h
    return out


if __name__ == "__main__":
    key = jax.random.PRNGKey(0)

    # Small shapes: nodes, in/out features, relations, edges.
    N, F_in, F_out, R, E = 32, 16, 32, 3, 64

    keys = jax.random.split(key, 12)
    (k_x, k_row, k_col, k_type, k_sl, k_bsl, k_w1, k_b1, k_g, k_b,
     k_w2, k_b2) = keys

    x = jax.random.normal(k_x, (N, F_in), dtype=jnp.float32)

    # Random graph: edge_index (2, E) in COO, edge_type (E,) in [0, R).
    row = jax.random.randint(k_row, (E,), 0, N)
    col = jax.random.randint(k_col, (E,), 0, N)
    edge_type = jax.random.randint(k_type, (E,), 0, R)

    # Dense per-relation adjacency (graph-construction glue, plain JAX).
    adj = jnp.zeros((R, N, N), dtype=jnp.float32).at[
        edge_type, row, col].add(1.0)

    scale = 0.1
    params = {
        "w_sl": scale * jax.random.normal(k_sl, (F_in, F_out), jnp.float32),
        "b_sl": scale * jax.random.normal(k_bsl, (F_out,), jnp.float32),
        "w1": scale * jax.random.normal(k_w1, (R, F_in, F_out), jnp.float32),
        # b1 is consumed only by the reference: BatchNorm cancels it exactly,
        # so the kernel never loads it (dead DMA + VPU work removed).
        "b1": scale * jax.random.normal(k_b1, (R, F_out), jnp.float32),
        "gamma": 1.0 + 0.2 * jax.random.normal(k_g, (R, F_out), jnp.float32),
        "beta": scale * jax.random.normal(k_b, (R, F_out), jnp.float32),
        "w2": scale * jax.random.normal(k_w2, (R, F_out, F_out), jnp.float32),
        "b2": scale * jax.random.normal(k_b2, (R, F_out), jnp.float32),
    }

    out = rgin_conv(x, adj, params)
    out = jax.block_until_ready(out)

    ref = _reference(x, adj, params)
    assert out.shape == (N, F_out)
    assert jnp.allclose(out, ref, rtol=1e-2, atol=1e-2), "mismatch vs reference"

    # TODO(synk): BatchNorm1d running_mean/running_var buffer updates (module
    # state) are not reproduced; forward output matches training-mode BN.
    print("KERNEL_OK")
</pallas_src>

<mosaic_0001>
module attributes {stable_mosaic.version = 11 : i64} {
  func.func @_agg_lin1_kernel(%arg0: i32, %arg1: i32, %arg2: i32, %arg3: memref<128x128xbf16, #tpu.memory_space<vmem>>, %arg4: memref<128x128xbf16, #tpu.memory_space<vmem>>, %arg5: memref<1x128x128xbf16, #tpu.memory_space<vmem>>, %arg6: memref<1x128x128xbf16, #tpu.memory_space<vmem>>, %arg7: memref<1x128x128xf32, #tpu.memory_space<vmem>>, %arg8: memref<1x8x128xf32, #tpu.memory_space<vmem>>, %arg9: memref<128x128xf32, #tpu.memory_space<vmem>>) attributes {dimension_semantics = [#tpu.dimension_semantics<parallel>, #tpu.dimension_semantics<parallel>, #tpu.dimension_semantics<arbitrary>], iteration_bounds = array<i64: 3, 1, 1>, scalar_prefetch = 0 : i64, scratch_operands = 1 : i64, tpu.core_type = #tpu.core_type<tc>, window_params = [{transform_indices = @transform_0, window_bounds = array<i64: 128, 128>}, {transform_indices = @transform_1, window_bounds = array<i64: 128, 128>}, {transform_indices = @transform_2, window_bounds = array<i64: 1, 128, 128>}, {transform_indices = @transform_3, window_bounds = array<i64: 1, 128, 128>}, {transform_indices = @transform_4, window_bounds = array<i64: 1, 128, 128>}, {transform_indices = @transform_5, window_bounds = array<i64: 1, 8, 128>}]} {
    %c0_i32 = arith.constant 0 : i32
    %0 = arith.cmpi eq, %arg2, %c0_i32 : i32
    %1 = arith.extui %0 : i1 to i32
    %c0_i32_0 = arith.constant 0 : i32
    %2 = arith.cmpi ne, %1, %c0_i32_0 : i32
    scf.if %2 {
      %cst_11 = arith.constant 0.000000e+00 : f32
      %13 = vector.broadcast %cst_11 : f32 to vector<128x128xf32>
      %c0_12 = arith.constant 0 : index
      %c0_13 = arith.constant 0 : index
      %14 = vector.load %arg9[%c0_12, %c0_13] : memref<128x128xf32, #tpu.memory_space<vmem>>, vector<128x128xf32>
      tpu.vector_store %arg9[%c0_12, %c0_13], %13 {strides = array<i32>} : memref<128x128xf32, #tpu.memory_space<vmem>>, vector<128x128xf32>,
    } else {
    }
    %c0 = arith.constant 0 : index
    %c0_1 = arith.constant 0 : index
    %3 = vector.load %arg9[%c0, %c0_1] : memref<128x128xf32, #tpu.memory_space<vmem>>, vector<128x128xf32>
    %c0_2 = arith.constant 0 : index
    %c0_3 = arith.constant 0 : index
    %c0_4 = arith.constant 0 : index
    %4 = vector.load %arg5[%c0_2, %c0_3, %c0_4] : memref<1x128x128xbf16, #tpu.memory_space<vmem>>, vector<1x128x128xbf16>
    %5 = vector.shape_cast %4 : vector<1x128x128xbf16> to vector<128x128xbf16>
    %c0_5 = arith.constant 0 : index
    %c0_6 = arith.constant 0 : index
    %6 = vector.load %arg4[%c0_5, %c0_6] : memref<128x128xbf16, #tpu.memory_space<vmem>>, vector<128x128xbf16>
    %cst = arith.constant dense<0.000000e+00> : vector<128x128xf32>
    %7 = tpu.matmul %5, %6, %cst {dimension_numbers = #tpu.dot_dimension_numbers<[1], [0], [0], [1], [0, 0, 1, 1], [], []>} : vector<128x128xbf16>, vector<128x128xbf16>, vector<128x128xf32> -> vector<128x128xf32>
    %8 = arith.addf %3, %7 : vector<128x128xf32>
    %c0_7 = arith.constant 0 : index
    %c0_8 = arith.constant 0 : index
    %9 = vector.load %arg9[%c0_7, %c0_8] : memref<128x128xf32, #tpu.memory_space<vmem>>, vector<128x128xf32>
    tpu.vector_store %arg9[%c0_7, %c0_8], %8 {strides = array<i32>} : memref<128x128xf32, #tpu.memory_space<vmem>>, vector<128x128xf32>,
    %c0_i32_9 = arith.constant 0 : i32
    %10 = arith.cmpi eq, %arg2, %c0_i32_9 : i32
    %11 = arith.extui %10 : i1 to i32
    %c0_i32_10 = arith.constant 0 : i32
    %12 = arith.cmpi ne, %11, %c0_i32_10 : i32
    scf.if %12 {
      %c0_11 = arith.constant 0 : index
      %c0_12 = arith.constant 0 : index
      %13 = vector.load %arg3[%c0_11, %c0_12] : memref<128x128xbf16, #tpu.memory_space<vmem>>, vector<128x128xbf16>
      %14 = arith.extf %13 : vector<128x128xbf16> to vector<128x128xf32>
      %c0_13 = arith.constant 0 : index
      %c0_14 = arith.constant 0 : index
      %15 = vector.load %arg9[%c0_13, %c0_14] : memref<128x128xf32, #tpu.memory_space<vmem>>, vector<128x128xf32>
      %16 = arith.addf %14, %15 : vector<128x128xf32>
      %17 = arith.truncf %16 : vector<128x128xf32> to vector<128x128xbf16>
      %c0_15 = arith.constant 0 : index
      %c0_16 = arith.constant 0 : index
      %c0_17 = arith.constant 0 : index
      %18 = vector.load %arg6[%c0_15, %c0_16, %c0_17] : memref<1x128x128xbf16, #tpu.memory_space<vmem>>, vector<1x128x128xbf16>
      %19 = vector.shape_cast %18 : vector<1x128x128xbf16> to vector<128x128xbf16>
      %cst_18 = arith.constant dense<0.000000e+00> : vector<128x128xf32>
      %20 = tpu.matmul %17, %19, %cst_18 {dimension_numbers = #tpu.dot_dimension_numbers<[1], [0], [0], [1], [0, 0, 1, 1], [], []>} : vector<128x128xbf16>, vector<128x128xbf16>, vector<128x128xf32> -> vector<128x128xf32>
      %c0_19 = arith.constant 0 : index
      %c0_20 = arith.constant 0 : index
      %c0_21 = arith.constant 0 : index
      %21 = vector.load %arg7[%c0_19, %c0_20, %c0_21] : memref<1x128x128xf32, #tpu.memory_space<vmem>>, vector<1x128x128xf32>
      %22 = vector.shape_cast %21 : vector<1x128x128xf32> to vector<128x128xf32>
      %23 = vector.shape_cast %20 : vector<128x128xf32> to vector<1x128x128xf32>
      tpu.vector_store %arg7[%c0_19, %c0_20, %c0_21], %23 {strides = array<i32>} : memref<1x128x128xf32, #tpu.memory_space<vmem>>, vector<1x128x128xf32>,
      %24 = tpu.iota {dimensions = array<i32: 0>} : vector<8x128xi32>
      %cst_22 = arith.constant dense<0.000000e+00> : vector<128xf32>
      %25 = vector.multi_reduction <add>, %20, %cst_22 [0] : vector<128x128xf32> to vector<128xf32>
      %26 = vector.shape_cast %25 : vector<128xf32> to vector<1x128xf32>
      %27 = vector.shape_cast %26 : vector<1x128xf32> to vector<1x128xf32>
      %28 = vector.broadcast %27 : vector<1x128xf32> to vector<8x128xf32>
      %29 = arith.mulf %20, %20 : vector<128x128xf32>
      %cst_23 = arith.constant dense<0.000000e+00> : vector<128xf32>
      %30 = vector.multi_reduction <add>, %29, %cst_23 [0] : vector<128x128xf32> to vector<128xf32>
      %31 = vector.shape_cast %30 : vector<128xf32> to vector<1x128xf32>
      %32 = vector.shape_cast %31 : vector<1x128xf32> to vector<1x128xf32>
      %33 = vector.broadcast %32 : vector<1x128xf32> to vector<8x128xf32>
      %c0_i32_24 = arith.constant 0 : i32
      %34 = vector.broadcast %c0_i32_24 : i32 to vector<8x128xi32>
      %35 = arith.cmpi eq, %24, %34 : vector<8x128xi32>
      %c1_i32 = arith.constant 1 : i32
      %36 = vector.broadcast %c1_i32 : i32 to vector<8x128xi32>
      %37 = arith.cmpi eq, %24, %36 : vector<8x128xi32>
      %cst_25 = arith.constant 0.000000e+00 : f32
      %38 = vector.broadcast %cst_25 : f32 to vector<8x128xf32>
      %39 = arith.select %37, %33, %38 : vector<8x128xi1>, vector<8x128xf32>
      %40 = arith.select %35, %28, %39 : vector<8x128xi1>, vector<8x128xf32>
      %c0_26 = arith.constant 0 : index
      %c0_27 = arith.constant 0 : index
      %c0_28 = arith.constant 0 : index
      %41 = vector.load %arg8[%c0_26, %c0_27, %c0_28] : memref<1x8x128xf32, #tpu.memory_space<vmem>>, vector<1x8x128xf32>
      %42 = vector.shape_cast %41 : vector<1x8x128xf32> to vector<8x128xf32>
      %43 = vector.shape_cast %40 : vector<8x128xf32> to vector<1x8x128xf32>
      tpu.vector_store %arg8[%c0_26, %c0_27, %c0_28], %43 {strides = array<i32>} : memref<1x8x128xf32, #tpu.memory_space<vmem>>, vector<1x8x128xf32>,
    } else {
    }
    return
  }
  func.func @transform_0(%arg0: i32, %arg1: i32, %arg2: i32) -> (i32, i32) {
    %c0_i32 = arith.constant 0 : i32
    %c0_i32_0 = arith.constant 0 : i32
    return %arg1, %c0_i32 : i32, i32
  }
  func.func @transform_1(%arg0: i32, %arg1: i32, %arg2: i32) -> (i32, i32) {
    %c0_i32 = arith.constant 0 : i32
    %c0_i32_0 = arith.constant 0 : i32
    return %arg2, %c0_i32 : i32, i32
  }
  func.func @transform_2(%arg0: i32, %arg1: i32, %arg2: i32) -> (i32, i32, i32) {
    %c0_i32 = arith.constant 0 : i32
    return %arg0, %arg1, %arg2 : i32, i32, i32
  }
  func.func @transform_3(%arg0: i32, %arg1: i32, %arg2: i32) -> (i32, i32, i32) {
    %c0_i32 = arith.constant 0 : i32
    %c0_i32_0 = arith.constant 0 : i32
    %c0_i32_1 = arith.constant 0 : i32
    return %arg0, %c0_i32, %c0_i32_0 : i32, i32, i32
  }
  func.func @transform_4(%arg0: i32, %arg1: i32, %arg2: i32) -> (i32, i32, i32) {
    %c0_i32 = arith.constant 0 : i32
    %c0_i32_0 = arith.constant 0 : i32
    return %arg0, %arg1, %c0_i32 : i32, i32, i32
  }
  func.func @transform_5(%arg0: i32, %arg1: i32, %arg2: i32) -> (i32, i32, i32) {
    %c0_i32 = arith.constant 0 : i32
    %c0_i32_0 = arith.constant 0 : i32
    return %arg0, %arg1, %c0_i32 : i32, i32, i32
  }
}

module attributes {stable_mosaic.version = 11 : i64} {
  func.func @_bn_lin2_kernel(%arg0: i32, %arg1: i32, %arg2: memref<1x128x128xf32, #tpu.memory_space<vmem>>, %arg3: memref<128x128xbf16, #tpu.memory_space<vmem>>, %arg4: memref<128x128xbf16, #tpu.memory_space<vmem>>, %arg5: memref<1x128xf32, #tpu.memory_space<vmem>>, %arg6: memref<1x1x128xf32, #tpu.memory_space<vmem>>, %arg7: memref<1x1x128xf32, #tpu.memory_space<vmem>>, %arg8: memref<1x128x128xbf16, #tpu.memory_space<vmem>>, %arg9: memref<1x1x128xf32, #tpu.memory_space<vmem>>, %arg10: memref<128x128xf32, #tpu.memory_space<vmem>>, %arg11: memref<128x128xf32, #tpu.memory_space<vmem>>) attributes {dimension_semantics = [#tpu.dimension_semantics<parallel>, #tpu.dimension_semantics<arbitrary>], iteration_bounds = array<i64: 1, 3>, scalar_prefetch = 0 : i64, scratch_operands = 1 : i64, tpu.core_type = #tpu.core_type<tc>, window_params = [{transform_indices = @transform_0, window_bounds = array<i64: 1, 128, 128>}, {transform_indices = @transform_1, window_bounds = array<i64: 128, 128>}, {pipeline_mode = #tpu.pipeline_mode<synchronous>, transform_indices = @transform_2, window_bounds = array<i64: 128, 128>}, {pipeline_mode = #tpu.pipeline_mode<synchronous>, transform_indices = @transform_3, window_bounds = array<i64: 1, 128>}, {transform_indices = @transform_4, window_bounds = array<i64: 1, 1, 128>}, {transform_indices = @transform_5, window_bounds = array<i64: 1, 1, 128>}, {transform_indices = @transform_6, window_bounds = array<i64: 1, 128, 128>}, {transform_indices = @transform_7, window_bounds = array<i64: 1, 1, 128>}, {transform_indices = @transform_8, window_bounds = array<i64: 128, 128>}]} {
    %c0_i32 = arith.constant 0 : i32
    %0 = arith.cmpi eq, %arg1, %c0_i32 : i32
    %1 = arith.extui %0 : i1 to i32
    %c0_i32_0 = arith.constant 0 : i32
    %2 = arith.cmpi ne, %1, %c0_i32_0 : i32
    scf.if %2 {
      %c0_21 = arith.constant 0 : index
      %c0_22 = arith.constant 0 : index
      %29 = vector.load %arg3[%c0_21, %c0_22] : memref<128x128xbf16, #tpu.memory_space<vmem>>, vector<128x128xbf16>
      %c0_23 = arith.constant 0 : index
      %c0_24 = arith.constant 0 : index
      %30 = vector.load %arg4[%c0_23, %c0_24] : memref<128x128xbf16, #tpu.memory_space<vmem>>, vector<128x128xbf16>
      %cst_25 = arith.constant dense<0.000000e+00> : vector<128x128xf32>
      %31 = tpu.matmul %29, %30, %cst_25 {dimension_numbers = #tpu.dot_dimension_numbers<[1], [0], [0], [1], [0, 0, 1, 1], [], []>} : vector<128x128xbf16>, vector<128x128xbf16>, vector<128x128xf32> -> vector<128x128xf32>
      %c0_26 = arith.constant 0 : index
      %c0_27 = arith.constant 0 : index
      %32 = vector.load %arg5[%c0_26, %c0_27] : memref<1x128xf32, #tpu.memory_space<vmem>>, vector<1x128xf32>
      %33 = vector.broadcast %32 : vector<1x128xf32> to vector<128x128xf32>
      %34 = arith.addf %31, %33 : vector<128x128xf32>
      %c0_28 = arith.constant 0 : index
      %c0_29 = arith.constant 0 : index
      %35 = vector.load %arg11[%c0_28, %c0_29] : memref<128x128xf32, #tpu.memory_space<vmem>>, vector<128x128xf32>
      tpu.vector_store %arg11[%c0_28, %c0_29], %34 {strides = array<i32>} : memref<128x128xf32, #tpu.memory_space<vmem>>, vector<128x128xf32>,
    } else {
    }
    %c0 = arith.constant 0 : index
    %c0_1 = arith.constant 0 : index
    %c0_2 = arith.constant 0 : index
    %3 = vector.load %arg2[%c0, %c0_1, %c0_2] : memref<1x128x128xf32, #tpu.memory_space<vmem>>, vector<1x128x128xf32>
    %4 = vector.shape_cast %3 : vector<1x128x128xf32> to vector<128x128xf32>
    %c0_3 = arith.constant 0 : index
    %c0_4 = arith.constant 0 : index
    %c0_5 = arith.constant 0 : index
    %5 = vector.load %arg6[%c0_3, %c0_4, %c0_5] : memref<1x1x128xf32, #tpu.memory_space<vmem>>, vector<1x1x128xf32>
    %6 = vector.shape_cast %5 : vector<1x1x128xf32> to vector<1x128xf32>
    %7 = vector.broadcast %6 : vector<1x128xf32> to vector<128x128xf32>
    %8 = arith.mulf %4, %7 : vector<128x128xf32>
    %c0_6 = arith.constant 0 : index
    %c0_7 = arith.constant 0 : index
    %c0_8 = arith.constant 0 : index
    %9 = vector.load %arg7[%c0_6, %c0_7, %c0_8] : memref<1x1x128xf32, #tpu.memory_space<vmem>>, vector<1x1x128xf32>
    %10 = vector.shape_cast %9 : vector<1x1x128xf32> to vector<1x128xf32>
    %11 = vector.broadcast %10 : vector<1x128xf32> to vector<128x128xf32>
    %12 = arith.addf %8, %11 : vector<128x128xf32>
    %cst = arith.constant 0.000000e+00 : f32
    %13 = vector.broadcast %cst : f32 to vector<128x128xf32>
    %14 = arith.maximumf %12, %13 : vector<128x128xf32>
    %c0_9 = arith.constant 0 : index
    %c0_10 = arith.constant 0 : index
    %15 = vector.load %arg11[%c0_9, %c0_10] : memref<128x128xf32, #tpu.memory_space<vmem>>, vector<128x128xf32>
    %16 = arith.truncf %14 : vector<128x128xf32> to vector<128x128xbf16>
    %c0_11 = arith.constant 0 : index
    %c0_12 = arith.constant 0 : index
    %c0_13 = arith.constant 0 : index
    %17 = vector.load %arg8[%c0_11, %c0_12, %c0_13] : memref<1x128x128xbf16, #tpu.memory_space<vmem>>, vector<1x128x128xbf16>
    %18 = vector.shape_cast %17 : vector<1x128x128xbf16> to vector<128x128xbf16>
    %cst_14 = arith.constant dense<0.000000e+00> : vector<128x128xf32>
    %19 = tpu.matmul %16, %18, %cst_14 {dimension_numbers = #tpu.dot_dimension_numbers<[1], [0], [0], [1], [0, 0, 1, 1], [], []>} : vector<128x128xbf16>, vector<128x128xbf16>, vector<128x128xf32> -> vector<128x128xf32>
    %c0_15 = arith.constant 0 : index
    %c0_16 = arith.constant 0 : index
    %c0_17 = arith.constant 0 : index
    %20 = vector.load %arg9[%c0_15, %c0_16, %c0_17] : memref<1x1x128xf32, #tpu.memory_space<vmem>>, vector<1x1x128xf32>
    %21 = vector.shape_cast %20 : vector<1x1x128xf32> to vector<1x128xf32>
    %22 = vector.broadcast %21 : vector<1x128xf32> to vector<128x128xf32>
    %23 = arith.addf %19, %22 : vector<128x128xf32>
    %24 = arith.addf %15, %23 : vector<128x128xf32>
    %c0_18 = arith.constant 0 : index
    %c0_19 = arith.constant 0 : index
    %25 = vector.load %arg11[%c0_18, %c0_19] : memref<128x128xf32, #tpu.memory_space<vmem>>, vector<128x128xf32>
    tpu.vector_store %arg11[%c0_18, %c0_19], %24 {strides = array<i32>} : memref<128x128xf32, #tpu.memory_space<vmem>>, vector<128x128xf32>,
    %c2_i32 = arith.constant 2 : i32
    %26 = arith.cmpi eq, %arg1, %c2_i32 : i32
    %27 = arith.extui %26 : i1 to i32
    %c0_i32_20 = arith.constant 0 : i32
    %28 = arith.cmpi ne, %27, %c0_i32_20 : i32
    scf.if %28 {
      %c0_21 = arith.constant 0 : index
      %c0_22 = arith.constant 0 : index
      %29 = vector.load %arg11[%c0_21, %c0_22] : memref<128x128xf32, #tpu.memory_space<vmem>>, vector<128x128xf32>
      %c0_23 = arith.constant 0 : index
      %c0_24 = arith.constant 0 : index
      %30 = vector.load %arg10[%c0_23, %c0_24] : memref<128x128xf32, #tpu.memory_space<vmem>>, vector<128x128xf32>
      tpu.vector_store %arg10[%c0_23, %c0_24], %29 {strides = array<i32>} : memref<128x128xf32, #tpu.memory_space<vmem>>, vector<128x128xf32>,
    } else {
    }
    return
  }
  func.func @transform_0(%arg0: i32, %arg1: i32) -> (i32, i32, i32) {
    %c0_i32 = arith.constant 0 : i32
    %c0_i32_0 = arith.constant 0 : i32
    return %arg1, %arg0, %c0_i32 : i32, i32, i32
  }
  func.func @transform_1(%arg0: i32, %arg1: i32) -> (i32, i32) {
    %c0_i32 = arith.constant 0 : i32
    %c0_i32_0 = arith.constant 0 : i32
    return %arg0, %c0_i32 : i32, i32
  }
  func.func @transform_2(%arg0: i32, %arg1: i32) -> (i32, i32) {
    %c0_i32 = arith.constant 0 : i32
    %c0_i32_0 = arith.constant 0 : i32
    %c0_i32_1 = arith.constant 0 : i32
    return %c0_i32, %c0_i32_0 : i32, i32
  }
  func.func @transform_3(%arg0: i32, %arg1: i32) -> (i32, i32) {
    %c0_i32 = arith.constant 0 : i32
    %c0_i32_0 = arith.constant 0 : i32
    %c0_i32_1 = arith.constant 0 : i32
    return %c0_i32, %c0_i32_0 : i32, i32
  }
  func.func @transform_4(%arg0: i32, %arg1: i32) -> (i32, i32, i32) {
    %c0_i32 = arith.constant 0 : i32
    %c0_i32_0 = arith.constant 0 : i32
    %c0_i32_1 = arith.constant 0 : i32
    return %arg1, %c0_i32, %c0_i32_0 : i32, i32, i32
  }
  func.func @transform_5(%arg0: i32, %arg1: i32) -> (i32, i32, i32) {
    %c0_i32 = arith.constant 0 : i32
    %c0_i32_0 = arith.constant 0 : i32
    %c0_i32_1 = arith.constant 0 : i32
    return %arg1, %c0_i32, %c0_i32_0 : i32, i32, i32
  }
  func.func @transform_6(%arg0: i32, %arg1: i32) -> (i32, i32, i32) {
    %c0_i32 = arith.constant 0 : i32
    %c0_i32_0 = arith.constant 0 : i32
    %c0_i32_1 = arith.constant 0 : i32
    return %arg1, %c0_i32, %c0_i32_0 : i32, i32, i32
  }
  func.func @transform_7(%arg0: i32, %arg1: i32) -> (i32, i32, i32) {
    %c0_i32 = arith.constant 0 : i32
    %c0_i32_0 = arith.constant 0 : i32
    %c0_i32_1 = arith.constant 0 : i32
    return %arg1, %c0_i32, %c0_i32_0 : i32, i32, i32
  }
  func.func @transform_8(%arg0: i32, %arg1: i32) -> (i32, i32) {
    %c0_i32 = arith.constant 0 : i32
    %c0_i32_0 = arith.constant 0 : i32
    return %arg0, %c0_i32 : i32, i32
  }
}

</mosaic_0001>

<llo_original>
// kernel: rgin_conv.2
$region0: #{rgin_conv.2}
  #allocation0 [shape = 'u32[]', space=smem, size = 0x4, offset = 0x4, fixed_abs, tag = 'smem constant byte address 0x4 - core index']
  #allocation1 [shape = 'u32[144,128]{1,0:T(1,128)}', space=vmem, size = 0x12000, scoped, tag = 'internal scratch']
  #allocation2 [shape = 'f32[128,128]{1,0:T(8,128)}', space=vmem, size = 0x10000, scoped, tag = 'scratch operand']
  %s0 = inlined_call_operand.vmem [shape: bf16[128,128], index: 0, kind: input, shape index: {}, may-alias: {0,1}]
  %s1 = inlined_call_operand.vmem [shape: bf16[128,128], index: 1, kind: input, shape index: {}, may-alias: {0,1}]
  %s2 = inlined_call_operand.vmem [shape: bf16[3,128,128], index: 2, kind: input, shape index: {}]
  %s3 = inlined_call_operand.vmem [shape: bf16[3,128,128], index: 3, kind: input, shape index: {}]
  %s4 = inlined_call_operand.vmem [shape: f32[3,128,128], index: 4, kind: output, shape index: {0}]
  %s5 = inlined_call_operand.vmem [shape: f32[3,8,128], index: 5, kind: output, shape index: {1}]
  %6 = xla_tuple %s4, %s5
  %s7 = sld [smem:[#allocation0]]
  $region65: #{rgin_conv.2} parent=0
    _
  %s9 = ssub.s32 1, %s7
  %s10 = scalar_select 0, %s9, %s7
  loop: start=0, step=1, limit=5
  $region2: #{rgin_conv.2} parent=0 // loop_pre_header
    _
  $region3: #{rgin_conv.2} parent=0 // loop_header
    %s12 = sphi 0, %s16
    %p13 = scmp.ge.s32.totalorder %s12, 5
    %s19 = sphi 0, %s38
    %s20 = sphi 0, %s34
    %s21 = sphi 0, %s30
    %s22 = sphi 0, %s19
    %s23 = sphi 0, %s20
    %s24 = sphi 0, %s21
    %s25 = sphi 0, %s22
    %s26 = sphi 0, %s23
    %s27 = sphi 0, %s24
    %s41 = sphi 0, %s43
    %s44 = sphi 0, %s41
    %s45 = sphi 0, %s44
    %s61 = sphi 0, %s45
    %s67 = sphi 0, %s69
    %s70 = sphi 0, %s67
    %s71 = sphi 0, %s70
    %s87 = sphi 0, %s71
    %s97 = sphi 0, %s99
    %s100 = sphi 0, %s97
    %s101 = sphi 0, %s100
    %s117 = sphi 0, %s101
    %s123 = sphi 0, %s125
    %s126 = sphi 0, %s123
    %s127 = sphi 0, %s126
    %s143 = sphi 0, %s127
    %s151 = sphi 0, %s153
    %s154 = sphi 0, %s151
    %s155 = sphi 0, %s154
    %s171 = sphi 0, %s155
    %s179 = sphi 0, %s181
    %s182 = sphi 0, %s179
    %s183 = sphi 0, %s182
    %s199 = sphi 0, %s183
  $region4: #{rgin_conv.2} parent=0 // loop_header_branch
    %15 = sbr.rel (%p13) target = $region8
  $region5: #{rgin_conv.2} parent=0 // loop_body
    %s17 = ssub.s32 %s12, 1
    %s18 = ssub.s32 %s12, 2
    %s28 = sadd.s32 1, %s21
    %p29 = scmp.ge.s32.totalorder %s28, 1
    %s30 = scalar_select %p29, 0, %s28
    %s31 = sadd.s32 1, %s20
    %s32 = scalar_select %p29, %s31, %s20
    %p33 = scmp.ge.s32.totalorder %s32, 1
    %s34 = scalar_select %p33, 0, %s32
    %s35 = sadd.s32 1, %s19
    %s36 = scalar_select %p33, %s35, %s19
    %p37 = scmp.ge.s32.totalorder %s36, 3
    %s38 = scalar_select %p37, 0, %s36
    %s39 = ssub.s32 %s20, %s34
    %p40 = scmp.eq.s32.totalorder %s39, 0
    %s42 = sadd.s32 %s41, 1
    %s43 = scalar_select %p40, %s41, %s42
    %p46 = pneg %p40
    %p47 = scmp.eq.s32.totalorder %s12, 2
    %p48 = por %p46, %p47
    %p49 = scmp.ne.s32.totalorder %s41, %s44
    %p50 = scmp.eq.s32.totalorder %s12, 0
    %p51 = por %p49, %p50
    %p52 = scmp.ne.s32.totalorder %s41, %s44
    %p53 = scmp.eq.s32.totalorder %s17, 2
    %p54 = por %p52, %p53
    %p55 = scmp.ne.s32.totalorder %s44, %s45
    %p56 = scmp.eq.s32.totalorder %s17, 0
    %p57 = por %p55, %p56
    %p58 = scmp.ne.s32.totalorder %s44, %s45
    %p59 = scmp.eq.s32.totalorder %s18, 2
    %p60 = por %p58, %p59
    %p62 = scmp.ne.s32.totalorder %s45, %s61
    %p63 = scmp.eq.s32.totalorder %s18, 0
    %p64 = por %p62, %p63
    %s65 = ssub.s32 %s21, %s30
    %p66 = scmp.eq.s32.totalorder %s65, 0
    %s68 = sadd.s32 %s67, 1
    %s69 = scalar_select %p66, %s67, %s68
    %p72 = pneg %p66
    %p73 = scmp.eq.s32.totalorder %s12, 2
    %p74 = por %p72, %p73
    %p75 = scmp.ne.s32.totalorder %s67, %s70
    %p76 = scmp.eq.s32.totalorder %s12, 0
    %p77 = por %p75, %p76
    %p78 = scmp.ne.s32.totalorder %s67, %s70
    %p79 = scmp.eq.s32.totalorder %s17, 2
    %p80 = por %p78, %p79
    %p81 = scmp.ne.s32.totalorder %s70, %s71
    %p82 = scmp.eq.s32.totalorder %s17, 0
    %p83 = por %p81, %p82
    %p84 = scmp.ne.s32.totalorder %s70, %s71
    %p85 = scmp.eq.s32.totalorder %s18, 2
    %p86 = por %p84, %p85
    %p88 = scmp.ne.s32.totalorder %s71, %s87
    %p89 = scmp.eq.s32.totalorder %s18, 0
    %p90 = por %p88, %p89
    %s91 = ssub.s32 %s19, %s38
    %s92 = ssub.s32 %s20, %s34
    %s93 = sor.u32 %s91, %s92
    %s94 = ssub.s32 %s21, %s30
    %s95 = sor.u32 %s93, %s94
    %p96 = scmp.eq.s32.totalorder %s95, 0
    %s98 = sadd.s32 %s97, 1
    %s99 = scalar_select %p96, %s97, %s98
    %p102 = pneg %p96
    %p103 = scmp.eq.s32.totalorder %s12, 2
    %p104 = por %p102, %p103
    %p105 = scmp.ne.s32.totalorder %s97, %s100
    %p106 = scmp.eq.s32.totalorder %s12, 0
    %p107 = por %p105, %p106
    %p108 = scmp.ne.s32.totalorder %s97, %s100
    %p109 = scmp.eq.s32.totalorder %s17, 2
    %p110 = por %p108, %p109
    %p111 = scmp.ne.s32.totalorder %s100, %s101
    %p112 = scmp.eq.s32.totalorder %s17, 0
    %p113 = por %p111, %p112
    %p114 = scmp.ne.s32.totalorder %s100, %s101
    %p115 = scmp.eq.s32.totalorder %s18, 2
    %p116 = por %p114, %p115
    %p118 = scmp.ne.s32.totalorder %s101, %s117
    %p119 = scmp.eq.s32.totalorder %s18, 0
    %p120 = por %p118, %p119
    %s121 = ssub.s32 %s19, %s38
    %p122 = scmp.eq.s32.totalorder %s121, 0
    %s124 = sadd.s32 %s123, 1
    %s125 = scalar_select %p122, %s123, %s124
    %p128 = pneg %p122
    %p129 = scmp.eq.s32.totalorder %s12, 2
    %p130 = por %p128, %p129
    %p131 = scmp.ne.s32.totalorder %s123, %s126
    %p132 = scmp.eq.s32.totalorder %s12, 0
    %p133 = por %p131, %p132
    %p134 = scmp.ne.s32.totalorder %s123, %s126
    %p135 = scmp.eq.s32.totalorder %s17, 2
    %p136 = por %p134, %p135
    %p137 = scmp.ne.s32.totalorder %s126, %s127
    %p138 = scmp.eq.s32.totalorder %s17, 0
    %p139 = por %p137, %p138
    %p140 = scmp.ne.s32.totalorder %s126, %s127
    %p141 = scmp.eq.s32.totalorder %s18, 2
    %p142 = por %p140, %p141
    %p144 = scmp.ne.s32.totalorder %s127, %s143
    %p145 = scmp.eq.s32.totalorder %s18, 0
    %p146 = por %p144, %p145
    %s147 = ssub.s32 %s19, %s38
    %s148 = ssub.s32 %s20, %s34
    %s149 = sor.u32 %s147, %s148
    %p150 = scmp.eq.s32.totalorder %s149, 0
    %s152 = sadd.s32 %s151, 1
    %s153 = scalar_select %p150, %s151, %s152
    %p156 = pneg %p150
    %p157 = scmp.eq.s32.totalorder %s12, 2
    %p158 = por %p156, %p157
    %p159 = scmp.ne.s32.totalorder %s151, %s154
    %p160 = scmp.eq.s32.totalorder %s12, 0
    %p161 = por %p159, %p160
    %p162 = scmp.ne.s32.totalorder %s151, %s154
    %p163 = scmp.eq.s32.totalorder %s17, 2
    %p164 = por %p162, %p163
    %p165 = scmp.ne.s32.totalorder %s154, %s155
    %p166 = scmp.eq.s32.totalorder %s17, 0
    %p167 = por %p165, %p166
    %p168 = scmp.ne.s32.totalorder %s154, %s155
    %p169 = scmp.eq.s32.totalorder %s18, 2
    %p170 = por %p168, %p169
    %p172 = scmp.ne.s32.totalorder %s155, %s171
    %p173 = scmp.eq.s32.totalorder %s18, 0
    %p174 = por %p172, %p173
    %s175 = ssub.s32 %s19, %s38
    %s176 = ssub.s32 %s20, %s34
    %s177 = sor.u32 %s175, %s176
    %p178 = scmp.eq.s32.totalorder %s177, 0
    %s180 = sadd.s32 %s179, 1
    %s181 = scalar_select %p178, %s179, %s180
    %p184 = pneg %p178
    %p185 = scmp.eq.s32.totalorder %s12, 2
    %p186 = por %p184, %p185
    %p187 = scmp.ne.s32.totalorder %s179, %s182
    %p188 = scmp.eq.s32.totalorder %s12, 0
    %p189 = por %p187, %p188
    %p190 = scmp.ne.s32.totalorder %s179, %s182
    %p191 = scmp.eq.s32.totalorder %s17, 2
    %p192 = por %p190, %p191
    %p193 = scmp.ne.s32.totalorder %s182, %s183
    %p194 = scmp.eq.s32.totalorder %s17, 0
    %p195 = por %p193, %p194
    %p196 = scmp.ne.s32.totalorder %s182, %s183
    %p197 = scmp.eq.s32.totalorder %s18, 2
    %p198 = por %p196, %p197
    %p200 = scmp.ne.s32.totalorder %s183, %s199
    %p201 = scmp.eq.s32.totalorder %s18, 0
    %p202 = por %p200, %p201
    %p203 = scmp.le.s32.totalorder 1, %s12
    %p204 = scmp.lt.s32.totalorder %s12, 4
    %p205 = pnand %p203, %p204
    %p206 = pneg %p205
    // Predicated region
    $region9: #{rgin_conv.2} parent=5 // pred_check
      _
    $region10: #{rgin_conv.2} parent=5 // pred_check_branch
      %208 = sbr.rel (%p205) target = $region12
    $region11: #{rgin_conv.2} parent=5 // pred_region
      %s209 = ssub.s32 %s12, 1
      // Predicated region
      $region13: #{rgin_conv.2} parent=11 // pred_check
        %p210 = pneg %p57
      $region14: #{rgin_conv.2} parent=11 // pred_check_branch
        %212 = sbr.rel (%p210) target = $region16
      $region15: #{rgin_conv.2} parent=11 // pred_region
        %s213 = smul.u32 16, %s23
        %p214 = scmp.lt.s32.totalorder %s213, 15
        %s215 = scalar_select %p214, %s213, 15
        %s216 = smul.addr %s215, 4
        %s217 = scalar_lea.vmem %s0, %s216
        %s218 = smul.u32 16, %s23
      $region16: #{rgin_conv.2} parent=11 // pred_fallthru
        _
      // Predicated region
      $region17: #{rgin_conv.2} parent=11 // pred_check
        %p219 = pneg %p83
      $region18: #{rgin_conv.2} parent=11 // pred_check_branch
        %221 = sbr.rel (%p219) target = $region20
      $region19: #{rgin_conv.2} parent=11 // pred_region
        %s222 = smul.u32 16, %s24
        %p223 = scmp.lt.s32.totalorder %s222, 15
        %s224 = scalar_select %p223, %s222, 15
        %s225 = smul.addr %s224, 4
        %s226 = scalar_lea.vmem %s1, %s225
        %s227 = smul.u32 16, %s24
      $region20: #{rgin_conv.2} parent=11 // pred_fallthru
        _
    $region12: #{rgin_conv.2} parent=5 // pred_fallthru
      _
    %p228 = scmp.lt.s32.totalorder %s12, 3
    // Predicated region
    $region21: #{rgin_conv.2} parent=5 // pred_check
      %p229 = pneg %p228
    $region22: #{rgin_conv.2} parent=5 // pred_check_branch
      %231 = sbr.rel (%p229) target = $region24
    $region23: #{rgin_conv.2} parent=5 // pred_region
      // Predicated region
      $region25: #{rgin_conv.2} parent=23 // pred_check
        %p232 = pneg %p107
      $region26: #{rgin_conv.2} parent=23 // pred_check_branch
        %234 = sbr.rel (%p232) target = $region28
      $region27: #{rgin_conv.2} parent=23 // pred_region
        %s235 = smul.u32 16, %s20
        %p236 = scmp.lt.s32.totalorder %s19, 2
        %s237 = scalar_select %p236, %s19, 2
        %p238 = scmp.lt.s32.totalorder %s235, 15
        %s239 = scalar_select %p238, %s235, 15
        %p240 = scmp.lt.s32.totalorder %s21, 0
        %s241 = scalar_select %p240, %s21, 0
        %s242 = sadd.s32 %s241, %s239
        %s243 = smul.addr %s237, 16
        %s244 = sadd.s32 %s242, %s243
        %s245 = smul.addr %s244, 4
        %s246 = scalar_lea.vmem %s2, %s245
        %s247 = smul.u32 16, %s20
      $region28: #{rgin_conv.2} parent=23 // pred_fallthru
        _
      // Predicated region
      $region29: #{rgin_conv.2} parent=23 // pred_check
        %p248 = pneg %p133
      $region30: #{rgin_conv.2} parent=23 // pred_check_branch
        %250 = sbr.rel (%p248) target = $region32
      $region31: #{rgin_conv.2} parent=23 // pred_region
        %p251 = scmp.lt.s32.totalorder %s19, 2
        %s252 = scalar_select %p251, %s19, 2
        %s253 = smul.addr %s252, 16
        %s254 = smul.addr %s253, 4
        %s255 = scalar_lea.vmem %s3, %s254
      $region32: #{rgin_conv.2} parent=23 // pred_fallthru
        _
    $region24: #{rgin_conv.2} parent=5 // pred_fallthru
      _
    %p256 = scmp.le.s32.totalorder 1, %s12
    %p257 = scmp.lt.s32.totalorder %s12, 4
    %p258 = pnand %p256, %p257
    %p259 = pneg %p258
    // Predicated region
    $region33: #{rgin_conv.2} parent=5 // pred_check
      _
    $region34: #{rgin_conv.2} parent=5 // pred_check_branch
      %261 = sbr.rel (%p258) target = $region36
    $region35: #{rgin_conv.2} parent=5 // pred_region
      %s262 = ssub.s32 %s12, 1
      %s263 = smul.u32 16, %s23
      %p264 = scmp.lt.s32.totalorder %s263, 15
      %s265 = scalar_select %p264, %s263, 15
      %s266 = smul.addr %s265, 4
      %s267 = scalar_lea.vmem %s0, %s266
      %p268 = pneg %p57
      %p269 = pneg %p54
      %s270 = smul.u32 16, %s24
      %p271 = scmp.lt.s32.totalorder %s270, 15
      %s272 = scalar_select %p271, %s270, 15
      %s273 = smul.addr %s272, 4
      %s274 = scalar_lea.vmem %s1, %s273
      %p275 = pneg %p83
      %p276 = pneg %p80
      %s277 = smul.u32 16, %s23
      %p278 = scmp.lt.s32.totalorder %s22, 2
      %s279 = scalar_select %p278, %s22, 2
      %p280 = scmp.lt.s32.totalorder %s277, 15
      %s281 = scalar_select %p280, %s277, 15
      %p282 = scmp.lt.s32.totalorder %s24, 0
      %s283 = scalar_select %p282, %s24, 0
      %s284 = sadd.s32 %s283, %s281
      %s285 = smul.addr %s279, 16
      %s286 = sadd.s32 %s284, %s285
      %s287 = smul.addr %s286, 4
      %s288 = scalar_lea.vmem %s2, %s287
      %p289 = pneg %p113
      %p290 = pneg %p110
      %p291 = scmp.lt.s32.totalorder %s22, 2
      %s292 = scalar_select %p291, %s22, 2
      %s293 = smul.addr %s292, 16
      %s294 = smul.addr %s293, 4
      %s295 = scalar_lea.vmem %s3, %s294
      %p296 = pneg %p139
      %p297 = pneg %p136
      %p298 = pneg %p167
      %p299 = pneg %p164
      %s300 = smul.u32 16, %s23
      %p301 = scmp.lt.s32.totalorder %s22, 2
      %s302 = scalar_select %p301, %s22, 2
      %p303 = scmp.lt.s32.totalorder %s300, 15
      %s304 = scalar_select %p303, %s300, 15
      %s305 = smul.addr %s302, 16
      %s306 = sadd.s32 %s304, %s305
      %s307 = smul.addr %s306, 8
      %s308 = scalar_lea.vmem %s4, %s307
      %p309 = pneg %p195
      %p310 = pneg %p192
      %p311 = scmp.lt.s32.totalorder %s22, 2
      %s312 = scalar_select %p311, %s22, 2
      %p313 = scmp.lt.s32.totalorder %s23, 0
      %s314 = scalar_select %p313, %s23, 0
      %s315 = sadd.s32 %s314, %s312
      %s316 = smul.addr %s315, 8
      %s317 = scalar_lea.vmem %s5, %s316
      %s318 = smul.u32 16, %s23
      %p319 = scmp.lt.s32.totalorder %s318, 15
      %s320 = scalar_select %p319, %s318, 15
      %s321 = smul.addr %s320, 4
      %s322 = scalar_lea.vmem %s0, %s321
      %s323 = smul.u32 16, %s23
      %s324 = smul.u32 16, %s24
      %p325 = scmp.lt.s32.totalorder %s324, 15
      %s326 = scalar_select %p325, %s324, 15
      %s327 = smul.addr %s326, 4
      %s328 = scalar_lea.vmem %s1, %s327
      %s329 = smul.u32 16, %s24
      %s330 = smul.u32 16, %s23
      %p331 = scmp.lt.s32.totalorder %s22, 2
      %s332 = scalar_select %p331, %s22, 2
      %p333 = scmp.lt.s32.totalorder %s330, 15
      %s334 = scalar_select %p333, %s330, 15
      %p335 = scmp.lt.s32.totalorder %s24, 0
      %s336 = scalar_select %p335, %s24, 0
      %s337 = sadd.s32 %s336, %s334
      %s338 = smul.addr %s332, 16
      %s339 = sadd.s32 %s337, %s338
      %s340 = smul.addr %s339, 4
      %s341 = scalar_lea.vmem %s2, %s340
      %s342 = smul.u32 16, %s23
      %p343 = scmp.lt.s32.totalorder %s22, 2
      %s344 = scalar_select %p343, %s22, 2
      %s345 = smul.addr %s344, 16
      %s346 = smul.addr %s345, 4
      %s347 = scalar_lea.vmem %s3, %s346
      %s348 = smul.u32 16, %s23
      %p349 = scmp.lt.s32.totalorder %s22, 2
      %s350 = scalar_select %p349, %s22, 2
      %p351 = scmp.lt.s32.totalorder %s348, 15
      %s352 = scalar_select %p351, %s348, 15
      %s353 = smul.addr %s350, 16
      %s354 = sadd.s32 %s352, %s353
      %s355 = smul.addr %s354, 8
      %s356 = scalar_lea.vmem %s4, %s355
      %s357 = smul.u32 16, %s23
      %p358 = scmp.lt.s32.totalorder %s22, 2
      %s359 = scalar_select %p358, %s22, 2
      %p360 = scmp.lt.s32.totalorder %s23, 0
      %s361 = scalar_select %p360, %s23, 0
      %s362 = sadd.s32 %s361, %s359
      %s363 = smul.addr %s362, 8
      %s364 = scalar_lea.vmem %s5, %s363
      %p366 = scmp.eq.s32.totalorder %s24, 0
      // Predicated region
      $region37: #{rgin_conv.2} parent=35 // pred_check
        %p367 = pneg %p366
      $region38: #{rgin_conv.2} parent=35 // pred_check_branch
        %369 = sbr.rel (%p367) target = $region40
      $region39: #{rgin_conv.2} parent=35 // pred_region
        %370 = vst [vmem:[#allocation2] sm:$0xff] 0.0
        %371 = vst [vmem:[#allocation2 + $0x8] sm:$0xff] 0.0
        %372 = vst [vmem:[#allocation2 + $0x10] sm:$0xff] 0.0
        %373 = vst [vmem:[#allocation2 + $0x18] sm:$0xff] 0.0
        %374 = vst [vmem:[#allocation2 + $0x20] sm:$0xff] 0.0
        %375 = vst [vmem:[#allocation2 + $0x28] sm:$0xff] 0.0
        %376 = vst [vmem:[#allocation2 + $0x30] sm:$0xff] 0.0
        %377 = vst [vmem:[#allocation2 + $0x38] sm:$0xff] 0.0
        %378 = vst [vmem:[#allocation2 + $0x40] sm:$0xff] 0.0
        %379 = vst [vmem:[#allocation2 + $0x48] sm:$0xff] 0.0
        %380 = vst [vmem:[#allocation2 + $0x50] sm:$0xff] 0.0
        %381 = vst [vmem:[#allocation2 + $0x58] sm:$0xff] 0.0
        %382 = vst [vmem:[#allocation2 + $0x60] sm:$0xff] 0.0
        %383 = vst [vmem:[#allocation2 + $0x68] sm:$0xff] 0.0
        %384 = vst [vmem:[#allocation2 + $0x70] sm:$0xff] 0.0
        %385 = vst [vmem:[#allocation2 + $0x78] sm:$0xff] 0.0
      $region40: #{rgin_conv.2} parent=35 // pred_fallthru
        _
      %v386 = vld [vmem:[#allocation2] sm:$0xff]
      %v387 = vld [vmem:[#allocation2 + $0x8] sm:$0xff]
      %v388 = vld [vmem:[#allocation2 + $0x10] sm:$0xff]
      %v389 = vld [vmem:[#allocation2 + $0x18] sm:$0xff]
      %v390 = vld [vmem:[#allocation2 + $0x20] sm:$0xff]
      %v391 = vld [vmem:[#allocation2 + $0x28] sm:$0xff]
      %v392 = vld [vmem:[#allocation2 + $0x30] sm:$0xff]
      %v393 = vld [vmem:[#allocation2 + $0x38] sm:$0xff]
      %v394 = vld [vmem:[#allocation2 + $0x40] sm:$0xff]
      %v395 = vld [vmem:[#allocation2 + $0x48] sm:$0xff]
      %v396 = vld [vmem:[#allocation2 + $0x50] sm:$0xff]
      %v397 = vld [vmem:[#allocation2 + $0x58] sm:$0xff]
      %v398 = vld [vmem:[#allocation2 + $0x60] sm:$0xff]
      %v399 = vld [vmem:[#allocation2 + $0x68] sm:$0xff]
      %v400 = vld [vmem:[#allocation2 + $0x70] sm:$0xff]
      %v401 = vld [vmem:[#allocation2 + $0x78] sm:$0xff]
      %v402 = vld [vmem:[%s341] sm:$0xf]
      %v403 = vld [vmem:[%s341 + $0x4] sm:$0xf]
      %v404 = vld [vmem:[%s341 + $0x8] sm:$0xf]
      %v405 = vld [vmem:[%s341 + $0xc] sm:$0xf]
      %v406 = vld [vmem:[%s341 + $0x10] sm:$0xf]
      %v407 = vld [vmem:[%s341 + $0x14] sm:$0xf]
      %v408 = vld [vmem:[%s341 + $0x18] sm:$0xf]
      %v409 = vld [vmem:[%s341 + $0x1c] sm:$0xf]
      %v410 = vld [vmem:[%s341 + $0x20] sm:$0xf]
      %v411 = vld [vmem:[%s341 + $0x24] sm:$0xf]
      %v412 = vld [vmem:[%s341 + $0x28] sm:$0xf]
      %v413 = vld [vmem:[%s341 + $0x2c] sm:$0xf]
      %v414 = vld [vmem:[%s341 + $0x30] sm:$0xf]
      %v415 = vld [vmem:[%s341 + $0x34] sm:$0xf]
      %v416 = vld [vmem:[%s341 + $0x38] sm:$0xf]
      %v417 = vld [vmem:[%s341 + $0x3c] sm:$0xf]
      %v418 = vld [vmem:[%s328] sm:$0xf]
      %v419 = vld [vmem:[%s328 + $0x4] sm:$0xf]
      %v420 = vld [vmem:[%s328 + $0x8] sm:$0xf]
      %v421 = vld [vmem:[%s328 + $0xc] sm:$0xf]
      %v422 = vld [vmem:[%s328 + $0x10] sm:$0xf]
      %v423 = vld [vmem:[%s328 + $0x14] sm:$0xf]
      %v424 = vld [vmem:[%s328 + $0x18] sm:$0xf]
      %v425 = vld [vmem:[%s328 + $0x1c] sm:$0xf]
      %v426 = vld [vmem:[%s328 + $0x20] sm:$0xf]
      %v427 = vld [vmem:[%s328 + $0x24] sm:$0xf]
      %v428 = vld [vmem:[%s328 + $0x28] sm:$0xf]
      %v429 = vld [vmem:[%s328 + $0x2c] sm:$0xf]
      %v430 = vld [vmem:[%s328 + $0x30] sm:$0xf]
      %v431 = vld [vmem:[%s328 + $0x34] sm:$0xf]
      %v432 = vld [vmem:[%s328 + $0x38] sm:$0xf]
      %v433 = vld [vmem:[%s328 + $0x3c] sm:$0xf]
      %v450 = vunpack.c.l.b16 %v402
      %v451 = vunpack.c.l.b16 %v403
      %v452 = vunpack.c.l.b16 %v404
      %v453 = vunpack.c.l.b16 %v405
      %v454 = vunpack.c.l.b16 %v406
      %v455 = vunpack.c.l.b16 %v407
      %v456 = vunpack.c.l.b16 %v408
      %v457 = vunpack.c.l.b16 %v409
      %v458 = vunpack.c.l.b16 %v410
      %v459 = vunpack.c.l.b16 %v411
      %v460 = vunpack.c.l.b16 %v412
      %v461 = vunpack.c.l.b16 %v413
      %v462 = vunpack.c.l.b16 %v414
      %v463 = vunpack.c.l.b16 %v415
      %v464 = vunpack.c.l.b16 %v416
      %v465 = vunpack.c.l.b16 %v417
      %v466 = vpack.c.b16 %v451, %v450
      %v467 = vpack.c.b16 %v453, %v452
      %v468 = vpack.c.b16 %v455, %v454
      %v469 = vpack.c.b16 %v457, %v456
      %v470 = vpack.c.b16 %v459, %v458
      %v471 = vpack.c.b16 %v461, %v460
      %v472 = vpack.c.b16 %v463, %v462
      %v473 = vpack.c.b16 %v465, %v464
      %v498 = vunpack.c.l.b16 %v418
      %v499 = vunpack.c.l.b16 %v419
      %v500 = vunpack.c.l.b16 %v420
      %v501 = vunpack.c.l.b16 %v421
      %v502 = vunpack.c.l.b16 %v422
      %v503 = vunpack.c.l.b16 %v423
      %v504 = vunpack.c.l.b16 %v424
      %v505 = vunpack.c.l.b16 %v425
      %v506 = vunpack.c.l.b16 %v426
      %v507 = vunpack.c.l.b16 %v427
      %v508 = vunpack.c.l.b16 %v428
      %v509 = vunpack.c.l.b16 %v429
      %v510 = vunpack.c.l.b16 %v430
      %v511 = vunpack.c.l.b16 %v431
      %v512 = vunpack.c.l.b16 %v432
      %v513 = vunpack.c.l.b16 %v433
      %v514 = vpack.c.b16 %v499, %v498
      %v515 = vpack.c.b16 %v501, %v500
      %v516 = vpack.c.b16 %v503, %v502
      %v517 = vpack.c.b16 %v505, %v504
      %v518 = vpack.c.b16 %v507, %v506
      %v519 = vpack.c.b16 %v509, %v508
      %v520 = vpack.c.b16 %v511, %v510
      %v521 = vpack.c.b16 %v513, %v512
      %530 = vmatprep.subr.bf16.mxu0 0
      %531 = vmatpush1.bf16.msra.mxu0 %v514
      %532 = vmatprep.subr.bf16.mxu0 0
      %533 = vmatpush1.bf16.msra.mxu0 %v515
      %534 = vmatprep.subr.bf16.mxu0 0
      %535 = vmatpush1.bf16.msra.mxu0 %v516
      %536 = vmatprep.subr.bf16.mxu0 0
      %537 = vmatpush1.bf16.msra.mxu0 %v517
      %538 = vmatprep.subr.bf16.mxu0 0
      %539 = vmatpush1.bf16.msra.mxu0 %v518
      %540 = vmatprep.subr.bf16.mxu0 0
      %541 = vmatpush1.bf16.msra.mxu0 %v519
      %542 = vmatprep.subr.bf16.mxu0 0
      %543 = vmatpush1.bf16.msra.mxu0 %v520
      %544 = vmatprep.subr.bf16.mxu0 0
      %545 = vmatpush1.bf16.msra.mxu0 %v521
      %546 = vmatprep.subr.bf16.mxu0 0
      %547 = vmatpush1.bf16.msra.mxu0 0
      %548 = vmatprep.subr.bf16.mxu0 0
      %549 = vmatpush1.bf16.msra.mxu0 0
      %550 = vmatprep.subr.bf16.mxu0 0
      %551 = vmatpush1.bf16.msra.mxu0 0
      %552 = vmatprep.subr.bf16.mxu0 0
      %553 = vmatpush1.bf16.msra.mxu0 0
      %554 = vmatprep.subr.bf16.mxu0 0
      %555 = vmatpush1.bf16.msra.mxu0 0
      %556 = vmatprep.subr.bf16.mxu0 0
      %557 = vmatpush1.bf16.msra.mxu0 0
      %558 = vmatprep.subr.bf16.mxu0 0
      %559 = vmatpush1.bf16.msra.mxu0 0
      %560 = vmatprep.subr.bf16.mxu0 0
      %561 = vmatpush1.bf16.msra.mxu0 0
      %562 = vmatprep.mubr.bf16.mxu0 0
      %563 = vmatmul.mubr.bf16.gmra.mrb[0].mxu0 %v466
      %v564 = vpop.f32.mrb[0].mxu0
      %v565 = vadd.f32 0.0, %v564
      %v566 = vpop.f32.mrb[0].mxu0
      %v567 = vpop.f32.mrb[0].mxu0
      %v568 = vadd.f32 0.0, %v567
      %v569 = vpop.f32.mrb[0].mxu0
      %570 = vmatprep.mubr.bf16.mxu0 0
      %571 = vmatmul.mubr.bf16.gmra.mrb[0].mxu0 %v467
      %v572 = vpop.f32.mrb[0].mxu0
      %v573 = vadd.f32 0.0, %v572
      %v574 = vpop.f32.mrb[0].mxu0
      %v575 = vpop.f32.mrb[0].mxu0
      %v576 = vadd.f32 0.0, %v575
      %v577 = vpop.f32.mrb[0].mxu0
      %578 = vmatprep.mubr.bf16.mxu0 0
      %579 = vmatmul.mubr.bf16.gmra.mrb[0].mxu0 %v468
      %v580 = vpop.f32.mrb[0].mxu0
      %v581 = vadd.f32 0.0, %v580
      %v582 = vpop.f32.mrb[0].mxu0
      %v583 = vpop.f32.mrb[0].mxu0
      %v584 = vadd.f32 0.0, %v583
      %v585 = vpop.f32.mrb[0].mxu0
      %586 = vmatprep.mubr.bf16.mxu0 0
      %587 = vmatmul.mubr.bf16.gmra.mrb[0].mxu0 %v469
      %v588 = vpop.f32.mrb[0].mxu0
      %v589 = vadd.f32 0.0, %v588
      %v590 = vpop.f32.mrb[0].mxu0
      %v591 = vpop.f32.mrb[0].mxu0
      %v592 = vadd.f32 0.0, %v591
      %v593 = vpop.f32.mrb[0].mxu0
      %594 = vmatprep.mubr.bf16.mxu0 0
      %595 = vmatmul.mubr.bf16.gmra.mrb[0].mxu0 %v470
      %v596 = vpop.f32.mrb[0].mxu0
      %v597 = vadd.f32 0.0, %v596
      %v598 = vpop.f32.mrb[0].mxu0
      %v599 = vpop.f32.mrb[0].mxu0
      %v600 = vadd.f32 0.0, %v599
      %v601 = vpop.f32.mrb[0].mxu0
      %602 = vmatprep.mubr.bf16.mxu0 0
      %603 = vmatmul.mubr.bf16.gmra.mrb[0].mxu0 %v471
      %v604 = vpop.f32.mrb[0].mxu0
      %v605 = vadd.f32 0.0, %v604
      %v606 = vpop.f32.mrb[0].mxu0
      %v607 = vpop.f32.mrb[0].mxu0
      %v608 = vadd.f32 0.0, %v607
      %v609 = vpop.f32.mrb[0].mxu0
      %610 = vmatprep.mubr.bf16.mxu0 0
      %611 = vmatmul.mubr.bf16.gmra.mrb[0].mxu0 %v472
      %v612 = vpop.f32.mrb[0].mxu0
      %v613 = vadd.f32 0.0, %v612
      %v614 = vpop.f32.mrb[0].mxu0
      %v615 = vpop.f32.mrb[0].mxu0
      %v616 = vadd.f32 0.0, %v615
      %v617 = vpop.f32.mrb[0].mxu0
      %618 = vmatprep.mubr.bf16.mxu0 0
      %619 = vmatmul.mubr.bf16.gmra.mrb[0].mxu0 %v473
      %v620 = vpop.f32.mrb[0].mxu0
      %v621 = vadd.f32 0.0, %v620
      %v622 = vpop.f32.mrb[0].mxu0
      %v623 = vpop.f32.mrb[0].mxu0
      %v624 = vadd.f32 0.0, %v623
      %v625 = vpop.f32.mrb[0].mxu0
      %626 = vdwg.mxu0
      %v627 = vadd.f32 %v386, %v565
      %v628 = vadd.f32 %v387, %v568
      %v629 = vadd.f32 %v388, %v573
      %v630 = vadd.f32 %v389, %v576
      %v631 = vadd.f32 %v390, %v581
      %v632 = vadd.f32 %v391, %v584
      %v633 = vadd.f32 %v392, %v589
      %v634 = vadd.f32 %v393, %v592
      %v635 = vadd.f32 %v394, %v597
      %v636 = vadd.f32 %v395, %v600
      %v637 = vadd.f32 %v396, %v605
      %v638 = vadd.f32 %v397, %v608
      %v639 = vadd.f32 %v398, %v613
      %v640 = vadd.f32 %v399, %v616
      %v641 = vadd.f32 %v400, %v621
      %v642 = vadd.f32 %v401, %v624
      %643 = vst [vmem:[#allocation2] sm:$0xff] %v627
      %644 = vst [vmem:[#allocation2 + $0x8] sm:$0xff] %v628
      %645 = vst [vmem:[#allocation2 + $0x10] sm:$0xff] %v629
      %646 = vst [vmem:[#allocation2 + $0x18] sm:$0xff] %v630
      %647 = vst [vmem:[#allocation2 + $0x20] sm:$0xff] %v631
      %648 = vst [vmem:[#allocation2 + $0x28] sm:$0xff] %v632
      %649 = vst [vmem:[#allocation2 + $0x30] sm:$0xff] %v633
      %650 = vst [vmem:[#allocation2 + $0x38] sm:$0xff] %v634
      %651 = vst [vmem:[#allocation2 + $0x40] sm:$0xff] %v635
      %652 = vst [vmem:[#allocation2 + $0x48] sm:$0xff] %v636
      %653 = vst [vmem:[#allocation2 + $0x50] sm:$0xff] %v637
      %654 = vst [vmem:[#allocation2 + $0x58] sm:$0xff] %v638
      %655 = vst [vmem:[#allocation2 + $0x60] sm:$0xff] %v639
      %656 = vst [vmem:[#allocation2 + $0x68] sm:$0xff] %v640
      %657 = vst [vmem:[#allocation2 + $0x70] sm:$0xff] %v641
      %658 = vst [vmem:[#allocation2 + $0x78] sm:$0xff] %v642
      // Predicated region
      $region41: #{rgin_conv.2} parent=35 // pred_check
        %p659 = pneg %p366
      $region42: #{rgin_conv.2} parent=35 // pred_check_branch
        %661 = sbr.rel (%p659) target = $region44
      $region43: #{rgin_conv.2} parent=35 // pred_region
        %v662 = vld [vmem:[%s322] sm:$0xf]
        %v663 = vld [vmem:[%s322 + $0x4] sm:$0xf]
        %v664 = vld [vmem:[%s322 + $0x8] sm:$0xf]
        %v665 = vld [vmem:[%s322 + $0xc] sm:$0xf]
        %v666 = vld [vmem:[%s322 + $0x10] sm:$0xf]
        %v667 = vld [vmem:[%s322 + $0x14] sm:$0xf]
        %v668 = vld [vmem:[%s322 + $0x18] sm:$0xf]
        %v669 = vld [vmem:[%s322 + $0x1c] sm:$0xf]
        %v670 = vld [vmem:[%s322 + $0x20] sm:$0xf]
        %v671 = vld [vmem:[%s322 + $0x24] sm:$0xf]
        %v672 = vld [vmem:[%s322 + $0x28] sm:$0xf]
        %v673 = vld [vmem:[%s322 + $0x2c] sm:$0xf]
        %v674 = vld [vmem:[%s322 + $0x30] sm:$0xf]
        %v675 = vld [vmem:[%s322 + $0x34] sm:$0xf]
        %v676 = vld [vmem:[%s322 + $0x38] sm:$0xf]
        %v677 = vld [vmem:[%s322 + $0x3c] sm:$0xf]
        %v678 = vunpack.c.l.bf16 %v662
        %v679 = vunpack.c.l.bf16 %v663
        %v680 = vunpack.c.l.bf16 %v664
        %v681 = vunpack.c.l.bf16 %v665
        %v682 = vunpack.c.l.bf16 %v666
        %v683 = vunpack.c.l.bf16 %v667
        %v684 = vunpack.c.l.bf16 %v668
        %v685 = vunpack.c.l.bf16 %v669
        %v686 = vunpack.c.l.bf16 %v670
        %v687 = vunpack.c.l.bf16 %v671
        %v688 = vunpack.c.l.bf16 %v672
        %v689 = vunpack.c.l.bf16 %v673
        %v690 = vunpack.c.l.bf16 %v674
        %v691 = vunpack.c.l.bf16 %v675
        %v692 = vunpack.c.l.bf16 %v676
        %v693 = vunpack.c.l.bf16 %v677
        %v694 = vld [vmem:[#allocation2] sm:$0xff]
        %v695 = vld [vmem:[#allocation2 + $0x8] sm:$0xff]
        %v696 = vld [vmem:[#allocation2 + $0x10] sm:$0xff]
        %v697 = vld [vmem:[#allocation2 + $0x18] sm:$0xff]
        %v698 = vld [vmem:[#allocation2 + $0x20] sm:$0xff]
        %v699 = vld [vmem:[#allocation2 + $0x28] sm:$0xff]
        %v700 = vld [vmem:[#allocation2 + $0x30] sm:$0xff]
        %v701 = vld [vmem:[#allocation2 + $0x38] sm:$0xff]
        %v702 = vld [vmem:[#allocation2 + $0x40] sm:$0xff]
        %v703 = vld [vmem:[#allocation2 + $0x48] sm:$0xff]
        %v704 = vld [vmem:[#allocation2 + $0x50] sm:$0xff]
        %v705 = vld [vmem:[#allocation2 + $0x58] sm:$0xff]
        %v706 = vld [vmem:[#allocation2 + $0x60] sm:$0xff]
        %v707 = vld [vmem:[#allocation2 + $0x68] sm:$0xff]
        %v708 = vld [vmem:[#allocation2 + $0x70] sm:$0xff]
        %v709 = vld [vmem:[#allocation2 + $0x78] sm:$0xff]
        %v710 = vadd.f32 %v678, %v694
        %v711 = vadd.f32 %v679, %v695
        %v712 = vadd.f32 %v680, %v696
        %v713 = vadd.f32 %v681, %v697
        %v714 = vadd.f32 %v682, %v698
        %v715 = vadd.f32 %v683, %v699
        %v716 = vadd.f32 %v684, %v700
        %v717 = vadd.f32 %v685, %v701
        %v718 = vadd.f32 %v686, %v702
        %v719 = vadd.f32 %v687, %v703
        %v720 = vadd.f32 %v688, %v704
        %v721 = vadd.f32 %v689, %v705
        %v722 = vadd.f32 %v690, %v706
        %v723 = vadd.f32 %v691, %v707
        %v724 = vadd.f32 %v692, %v708
        %v725 = vadd.f32 %v693, %v709
        %v726 = vpack.c.bf16 %v711, %v710
        %v727 = vpack.c.bf16 %v713, %v712
        %v728 = vpack.c.bf16 %v715, %v714
        %v729 = vpack.c.bf16 %v717, %v716
        %v730 = vpack.c.bf16 %v719, %v718
        %v731 = vpack.c.bf16 %v721, %v720
        %v732 = vpack.c.bf16 %v723, %v722
        %v733 = vpack.c.bf16 %v725, %v724
        %v734 = vld [vmem:[%s347] sm:$0xf]
        %v735 = vld [vmem:[%s347 + $0x4] sm:$0xf]
        %v736 = vld [vmem:[%s347 + $0x8] sm:$0xf]
        %v737 = vld [vmem:[%s347 + $0xc] sm:$0xf]
        %v738 = vld [vmem:[%s347 + $0x10] sm:$0xf]
        %v739 = vld [vmem:[%s347 + $0x14] sm:$0xf]
        %v740 = vld [vmem:[%s347 + $0x18] sm:$0xf]
        %v741 = vld [vmem:[%s347 + $0x1c] sm:$0xf]
        %v742 = vld [vmem:[%s347 + $0x20] sm:$0xf]
        %v743 = vld [vmem:[%s347 + $0x24] sm:$0xf]
        %v744 = vld [vmem:[%s347 + $0x28] sm:$0xf]
        %v745 = vld [vmem:[%s347 + $0x2c] sm:$0xf]
        %v746 = vld [vmem:[%s347 + $0x30] sm:$0xf]
        %v747 = vld [vmem:[%s347 + $0x34] sm:$0xf]
        %v748 = vld [vmem:[%s347 + $0x38] sm:$0xf]
        %v749 = vld [vmem:[%s347 + $0x3c] sm:$0xf]
        %v766 = vunpack.c.l.b16 %v734
        %v767 = vunpack.c.l.b16 %v735
        %v768 = vunpack.c.l.b16 %v736
        %v769 = vunpack.c.l.b16 %v737
        %v770 = vunpack.c.l.b16 %v738
        %v771 = vunpack.c.l.b16 %v739
        %v772 = vunpack.c.l.b16 %v740
        %v773 = vunpack.c.l.b16 %v741
        %v774 = vunpack.c.l.b16 %v742
        %v775 = vunpack.c.l.b16 %v743
        %v776 = vunpack.c.l.b16 %v744
        %v777 = vunpack.c.l.b16 %v745
        %v778 = vunpack.c.l.b16 %v746
        %v779 = vunpack.c.l.b16 %v747
        %v780 = vunpack.c.l.b16 %v748
        %v781 = vunpack.c.l.b16 %v749
        %v782 = vpack.c.b16 %v767, %v766
        %v783 = vpack.c.b16 %v769, %v768
        %v784 = vpack.c.b16 %v771, %v770
        %v785 = vpack.c.b16 %v773, %v772
        %v786 = vpack.c.b16 %v775, %v774
        %v787 = vpack.c.b16 %v777, %v776
        %v788 = vpack.c.b16 %v779, %v778
        %v789 = vpack.c.b16 %v781, %v780
        %798 = vmatprep.subr.bf16.mxu0 0
        %799 = vmatpush1.bf16.msra.mxu0 %v782
        %800 = vmatprep.subr.bf16.mxu0 0
        %801 = vmatpush1.bf16.msra.mxu0 %v783
        %802 = vmatprep.subr.bf16.mxu0 0
        %803 = vmatpush1.bf16.msra.mxu0 %v784
        %804 = vmatprep.subr.bf16.mxu0 0
        %805 = vmatpush1.bf16.msra.mxu0 %v785
        %806 = vmatprep.subr.bf16.mxu0 0
        %807 = vmatpush1.bf16.msra.mxu0 %v786
        %808 = vmatprep.subr.bf16.mxu0 0
        %809 = vmatpush1.bf16.msra.mxu0 %v787
        %810 = vmatprep.subr.bf16.mxu0 0
        %811 = vmatpush1.bf16.msra.mxu0 %v788
        %812 = vmatprep.subr.bf16.mxu0 0
        %813 = vmatpush1.bf16.msra.mxu0 %v789
        %814 = vmatprep.subr.bf16.mxu0 0
        %815 = vmatpush1.bf16.msra.mxu0 0
        %816 = vmatprep.subr.bf16.mxu0 0
        %817 = vmatpush1.bf16.msra.mxu0 0
        %818 = vmatprep.subr.bf16.mxu0 0
        %819 = vmatpush1.bf16.msra.mxu0 0
        %820 = vmatprep.subr.bf16.mxu0 0
        %821 = vmatpush1.bf16.msra.mxu0 0
        %822 = vmatprep.subr.bf16.mxu0 0
        %823 = vmatpush1.bf16.msra.mxu0 0
        %824 = vmatprep.subr.bf16.mxu0 0
        %825 = vmatpush1.bf16.msra.mxu0 0
        %826 = vmatprep.subr.bf16.mxu0 0
        %827 = vmatpush1.bf16.msra.mxu0 0
        %828 = vmatprep.subr.bf16.mxu0 0
        %829 = vmatpush1.bf16.msra.mxu0 0
        %830 = vmatprep.mubr.bf16.mxu0 0
        %831 = vmatmul.mubr.bf16.gmra.mrb[0].mxu0 %v726
        %v832 = vpop.f32.mrb[0].mxu0
        %v833 = vadd.f32 0.0, %v832
        %v834 = vpop.f32.mrb[0].mxu0
        %v835 = vpop.f32.mrb[0].mxu0
        %v836 = vadd.f32 0.0, %v835
        %v837 = vpop.f32.mrb[0].mxu0
        %838 = vmatprep.mubr.bf16.mxu0 0
        %839 = vmatmul.mubr.bf16.gmra.mrb[0].mxu0 %v727
        %v840 = vpop.f32.mrb[0].mxu0
        %v841 = vadd.f32 0.0, %v840
        %v842 = vpop.f32.mrb[0].mxu0
        %v843 = vpop.f32.mrb[0].mxu0
        %v844 = vadd.f32 0.0, %v843
        %v845 = vpop.f32.mrb[0].mxu0
        %846 = vmatprep.mubr.bf16.mxu0 0
        %847 = vmatmul.mubr.bf16.gmra.mrb[0].mxu0 %v728
        %v848 = vpop.f32.mrb[0].mxu0
        %v849 = vadd.f32 0.0, %v848
        %v850 = vpop.f32.mrb[0].mxu0
        %v851 = vpop.f32.mrb[0].mxu0
        %v852 = vadd.f32 0.0, %v851
        %v853 = vpop.f32.mrb[0].mxu0
        %854 = vmatprep.mubr.bf16.mxu0 0
        %855 = vmatmul.mubr.bf16.gmra.mrb[0].mxu0 %v729
        %v856 = vpop.f32.mrb[0].mxu0
        %v857 = vadd.f32 0.0, %v856
        %v858 = vpop.f32.mrb[0].mxu0
        %v859 = vpop.f32.mrb[0].mxu0
        %v860 = vadd.f32 0.0, %v859
        %v861 = vpop.f32.mrb[0].mxu0
        %862 = vmatprep.mubr.bf16.mxu0 0
        %863 = vmatmul.mubr.bf16.gmra.mrb[0].mxu0 %v730
        %v864 = vpop.f32.mrb[0].mxu0
        %v865 = vadd.f32 0.0, %v864
        %v866 = vpop.f32.mrb[0].mxu0
        %v867 = vpop.f32.mrb[0].mxu0
        %v868 = vadd.f32 0.0, %v867
        %v869 = vpop.f32.mrb[0].mxu0
        %870 = vmatprep.mubr.bf16.mxu0 0
        %871 = vmatmul.mubr.bf16.gmra.mrb[0].mxu0 %v731
        %v872 = vpop.f32.mrb[0].mxu0
        %v873 = vadd.f32 0.0, %v872
        %v874 = vpop.f32.mrb[0].mxu0
        %v875 = vpop.f32.mrb[0].mxu0
        %v876 = vadd.f32 0.0, %v875
        %v877 = vpop.f32.mrb[0].mxu0
        %878 = vmatprep.mubr.bf16.mxu0 0
        %879 = vmatmul.mubr.bf16.gmra.mrb[0].mxu0 %v732
        %v880 = vpop.f32.mrb[0].mxu0
        %v881 = vadd.f32 0.0, %v880
        %v882 = vpop.f32.mrb[0].mxu0
        %v883 = vpop.f32.mrb[0].mxu0
        %v884 = vadd.f32 0.0, %v883
        %v885 = vpop.f32.mrb[0].mxu0
        %886 = vmatprep.mubr.bf16.mxu0 0
        %887 = vmatmul.mubr.bf16.gmra.mrb[0].mxu0 %v733
        %v888 = vpop.f32.mrb[0].mxu0
        %v889 = vadd.f32 0.0, %v888
        %v890 = vpop.f32.mrb[0].mxu0
        %v891 = vpop.f32.mrb[0].mxu0
        %v892 = vadd.f32 0.0, %v891
        %v893 = vpop.f32.mrb[0].mxu0
        %894 = vdwg.mxu0
        %895 = vst [vmem:[%s356] sm:$0xff] %v833
        %896 = vst [vmem:[%s356 + $0x8] sm:$0xff] %v836
        %897 = vst [vmem:[%s356 + $0x10] sm:$0xff] %v841
        %898 = vst [vmem:[%s356 + $0x18] sm:$0xff] %v844
        %899 = vst [vmem:[%s356 + $0x20] sm:$0xff] %v849
        %900 = vst [vmem:[%s356 + $0x28] sm:$0xff] %v852
        %901 = vst [vmem:[%s356 + $0x30] sm:$0xff] %v857
        %902 = vst [vmem:[%s356 + $0x38] sm:$0xff] %v860
        %903 = vst [vmem:[%s356 + $0x40] sm:$0xff] %v865
        %904 = vst [vmem:[%s356 + $0x48] sm:$0xff] %v868
        %905 = vst [vmem:[%s356 + $0x50] sm:$0xff] %v873
        %906 = vst [vmem:[%s356 + $0x58] sm:$0xff] %v876
        %907 = vst [vmem:[%s356 + $0x60] sm:$0xff] %v881
        %908 = vst [vmem:[%s356 + $0x68] sm:$0xff] %v884
        %909 = vst [vmem:[%s356 + $0x70] sm:$0xff] %v889
        %910 = vst [vmem:[%s356 + $0x78] sm:$0xff] %v892
        %v911 = vlaneseq
        %v912 = vshrl.u32 %v911, 7
        %v913 = vadd.f32 %v833, %v836
        %v914 = vadd.f32 %v913, %v841
        %v915 = vadd.f32 %v914, %v844
        %v916 = vadd.f32 %v915, %v849
        %v917 = vadd.f32 %v916, %v852
        %v918 = vadd.f32 %v917, %v857
        %v919 = vadd.f32 %v918, %v860
        %v920 = vadd.f32 %v919, %v865
        %v921 = vadd.f32 %v920, %v868
        %v922 = vadd.f32 %v921, %v873
        %v923 = vadd.f32 %v922, %v876
        %v924 = vadd.f32 %v923, %v881
        %v925 = vadd.f32 %v924, %v884
        %v926 = vadd.f32 %v925, %v889
        %v927 = vadd.f32 %v926, %v892
        %v928 = vrot.slane %v927, 4
        %v929 = vadd.f32 %v927, %v928
        %v930 = vrot.slane %v929, 2
        %v931 = vadd.f32 %v929, %v930
        %v932 = vrot.slane %v931, 1
        %v933 = vadd.f32 %v931, %v932
        %v934 = vmul.f32 %v833, %v833
        %v935 = vmul.f32 %v836, %v836
        %v936 = vmul.f32 %v841, %v841
        %v937 = vmul.f32 %v844, %v844
        %v938 = vmul.f32 %v849, %v849
        %v939 = vmul.f32 %v852, %v852
        %v940 = vmul.f32 %v857, %v857
        %v941 = vmul.f32 %v860, %v860
        %v942 = vmul.f32 %v865, %v865
        %v943 = vmul.f32 %v868, %v868
        %v944 = vmul.f32 %v873, %v873
        %v945 = vmul.f32 %v876, %v876
        %v946 = vmul.f32 %v881, %v881
        %v947 = vmul.f32 %v884, %v884
        %v948 = vmul.f32 %v889, %v889
        %v949 = vmul.f32 %v892, %v892
        %v950 = vadd.f32 %v934, %v935
        %v951 = vadd.f32 %v950, %v936
        %v952 = vadd.f32 %v951, %v937
        %v953 = vadd.f32 %v952, %v938
        %v954 = vadd.f32 %v953, %v939
        %v955 = vadd.f32 %v954, %v940
        %v956 = vadd.f32 %v955, %v941
        %v957 = vadd.f32 %v956, %v942
        %v958 = vadd.f32 %v957, %v943
        %v959 = vadd.f32 %v958, %v944
        %v960 = vadd.f32 %v959, %v945
        %v961 = vadd.f32 %v960, %v946
        %v962 = vadd.f32 %v961, %v947
        %v963 = vadd.f32 %v962, %v948
        %v964 = vadd.f32 %v963, %v949
        %v965 = vrot.slane %v964, 4
        %v966 = vadd.f32 %v964, %v965
        %v967 = vrot.slane %v966, 2
        %v968 = vadd.f32 %v966, %v967
        %v969 = vrot.slane %v968, 1
        %v970 = vadd.f32 %v968, %v969
        %vm971 = vcmp.eq.s32.totalorder %v912, 0
        %vm972 = vcmp.eq.s32.totalorder %v912, 1
        %v973 = vsel %vm972, %v970, 0.0
        %v974 = vsel %vm971, %v933, %v973
        %975 = vst [vmem:[%s364] sm:$0xff] %v974
      $region44: #{rgin_conv.2} parent=35 // pred_fallthru
        _
      %s976 = smul.u32 16, %s23
      %p977 = scmp.lt.s32.totalorder %s22, 2
      %s978 = scalar_select %p977, %s22, 2
      %p979 = scmp.lt.s32.totalorder %s976, 15
      %s980 = scalar_select %p979, %s976, 15
      %s981 = smul.addr %s978, 16
      %s982 = sadd.s32 %s980, %s981
      %s983 = smul.addr %s982, 8
      %s984 = scalar_lea.vmem %s4, %s983
      %p985 = scmp.lt.s32.totalorder %s22, 2
      %s986 = scalar_select %p985, %s22, 2
      %p987 = scmp.lt.s32.totalorder %s23, 0
      %s988 = scalar_select %p987, %s23, 0
      %s989 = sadd.s32 %s988, %s986
      %s990 = smul.addr %s989, 8
      %s991 = scalar_lea.vmem %s5, %s990
      // Predicated region
      $region45: #{rgin_conv.2} parent=35 // pred_check
        %p992 = pneg %p164
      $region46: #{rgin_conv.2} parent=35 // pred_check_branch
        %994 = sbr.rel (%p992) target = $region48
      $region47: #{rgin_conv.2} parent=35 // pred_region
        %s995 = smul.u32 16, %s23
      $region48: #{rgin_conv.2} parent=35 // pred_fallthru
        _
      // Predicated region
      $region49: #{rgin_conv.2} parent=35 // pred_check
        %p996 = pneg %p192
      $region50: #{rgin_conv.2} parent=35 // pred_check_branch
        %998 = sbr.rel (%p996) target = $region52
      $region51: #{rgin_conv.2} parent=35 // pred_region
        _
      $region52: #{rgin_conv.2} parent=35 // pred_fallthru
        _
    $region36: #{rgin_conv.2} parent=5 // pred_fallthru
      _
    %p999 = scmp.le.s32.totalorder 2, %s12
    // Predicated region
    $region53: #{rgin_conv.2} parent=5 // pred_check
      %p1000 = pneg %p999
    $region54: #{rgin_conv.2} parent=5 // pred_check_branch
      %1002 = sbr.rel (%p1000) target = $region56
    $region55: #{rgin_conv.2} parent=5 // pred_region
      %s1003 = ssub.s32 %s12, 2
      // Predicated region
      $region57: #{rgin_conv.2} parent=55 // pred_check
        %p1004 = pneg %p170
      $region58: #{rgin_conv.2} parent=55 // pred_check_branch
        %1006 = sbr.rel (%p1004) target = $region60
      $region59: #{rgin_conv.2} parent=55 // pred_region
        %s1007 = smul.u32 16, %s26
        %p1008 = scmp.lt.s32.totalorder %s25, 2
        %s1009 = scalar_select %p1008, %s25, 2
        %p1010 = scmp.lt.s32.totalorder %s1007, 15
        %s1011 = scalar_select %p1010, %s1007, 15
        %s1012 = smul.addr %s1009, 16
        %s1013 = sadd.s32 %s1011, %s1012
        %s1014 = smul.addr %s1013, 8
        %s1015 = scalar_lea.vmem %s4, %s1014
      $region60: #{rgin_conv.2} parent=55 // pred_fallthru
        _
      // Predicated region
      $region61: #{rgin_conv.2} parent=55 // pred_check
        %p1016 = pneg %p198
      $region62: #{rgin_conv.2} parent=55 // pred_check_branch
        %1018 = sbr.rel (%p1016) target = $region64
      $region63: #{rgin_conv.2} parent=55 // pred_region
        %p1019 = scmp.lt.s32.totalorder %s25, 2
        %s1020 = scalar_select %p1019, %s25, 2
        %p1021 = scmp.lt.s32.totalorder %s26, 0
        %s1022 = scalar_select %p1021, %s26, 0
        %s1023 = sadd.s32 %s1022, %s1020
        %s1024 = smul.addr %s1023, 8
        %s1025 = scalar_lea.vmem %s5, %s1024
      $region64: #{rgin_conv.2} parent=55 // pred_fallthru
        _
    $region56: #{rgin_conv.2} parent=5 // pred_fallthru
      _
  $region6: #{rgin_conv.2} parent=0 // loop_footer
    %s16 = sadd.s32 1, %s12
  $region7: #{rgin_conv.2} parent=0 // loop_footer_branch
    %11 = sbr.rel target = $region3
  $region8: #{rgin_conv.2} parent=0 // loop_exit
    _

// kernel: rgin_conv.3
$region0: #{rgin_conv.3}
  #allocation0 [shape = 'u32[]', space=smem, size = 0x4, offset = 0x4, fixed_abs, tag = 'smem constant byte address 0x4 - core index']
  #allocation1 [shape = 'u32[144,128]{1,0:T(1,128)}', space=vmem, size = 0x12000, scoped, tag = 'internal scratch']
  #allocation2 [shape = 'f32[128,128]{1,0:T(8,128)}', space=vmem, size = 0x10000, scoped, tag = 'scratch operand']
  %s0 = inlined_call_operand.vmem [shape: f32[3,128,128], index: 0, kind: input, shape index: {}]
  %s1 = inlined_call_operand.vmem [shape: bf16[128,128], index: 1, kind: input, shape index: {}]
  %s2 = inlined_call_operand.vmem [shape: bf16[128,128], index: 2, kind: input, shape index: {}]
  %s3 = inlined_call_operand.vmem [shape: f32[1,128], index: 3, kind: input, shape index: {}]
  %s4 = inlined_call_operand.vmem [shape: f32[3,1,128], index: 4, kind: input, shape index: {}]
  %s5 = inlined_call_operand.vmem [shape: f32[3,1,128], index: 5, kind: input, shape index: {}]
  %s6 = inlined_call_operand.vmem [shape: bf16[3,128,128], index: 6, kind: input, shape index: {}]
  %s7 = inlined_call_operand.vmem [shape: f32[3,1,128], index: 7, kind: input, shape index: {}]
  %s8 = inlined_call_operand.vmem [shape: f32[128,128], index: 8, kind: output, shape index: {}]
  %s9 = sld [smem:[#allocation0]]
  $region73: #{rgin_conv.3} parent=0
    _
  %s11 = ssub.s32 1, %s9
  %s12 = scalar_select 0, %s11, %s9
  loop: start=0, step=1, limit=5
  $region2: #{rgin_conv.3} parent=0 // loop_pre_header
    _
  $region3: #{rgin_conv.3} parent=0 // loop_header
    %s14 = sphi 0, %s18
    %p15 = scmp.ge.s32.totalorder %s14, 5
    %s21 = sphi 0, %s33
    %s22 = sphi 0, %s29
    %s23 = sphi 0, %s21
    %s24 = sphi 0, %s22
    %s25 = sphi 0, %s23
    %s26 = sphi 0, %s24
    %s38 = sphi 0, %s40
    %s41 = sphi 0, %s38
    %s42 = sphi 0, %s41
    %s58 = sphi 0, %s42
    %s64 = sphi 0, %s66
    %s67 = sphi 0, %s64
    %s68 = sphi 0, %s67
    %s84 = sphi 0, %s68
    %s88 = sphi 0, %s88
    %s90 = sphi 0, %s88
    %s91 = sphi 0, %s90
    %s105 = sphi 0, %s91
    %s109 = sphi 0, %s109
    %s111 = sphi 0, %s109
    %s112 = sphi 0, %s111
    %s126 = sphi 0, %s112
    %s132 = sphi 0, %s134
    %s135 = sphi 0, %s132
    %s136 = sphi 0, %s135
    %s152 = sphi 0, %s136
    %s158 = sphi 0, %s160
    %s161 = sphi 0, %s158
    %s162 = sphi 0, %s161
    %s178 = sphi 0, %s162
    %s184 = sphi 0, %s186
    %s187 = sphi 0, %s184
    %s188 = sphi 0, %s187
    %s204 = sphi 0, %s188
    %s210 = sphi 0, %s212
    %s213 = sphi 0, %s210
    %s214 = sphi 0, %s213
    %s230 = sphi 0, %s214
    %s236 = sphi 0, %s238
    %s239 = sphi 0, %s236
    %s240 = sphi 0, %s239
    %s256 = sphi 0, %s240
  $region4: #{rgin_conv.3} parent=0 // loop_header_branch
    %17 = sbr.rel (%p15) target = $region8
  $region5: #{rgin_conv.3} parent=0 // loop_body
    %s19 = ssub.s32 %s14, 1
    %s20 = ssub.s32 %s14, 2
    %s27 = sadd.s32 1, %s22
    %p28 = scmp.ge.s32.totalorder %s27, 3
    %s29 = scalar_select %p28, 0, %s27
    %s30 = sadd.s32 1, %s21
    %s31 = scalar_select %p28, %s30, %s21
    %p32 = scmp.ge.s32.totalorder %s31, 1
    %s33 = scalar_select %p32, 0, %s31
    %s34 = ssub.s32 %s22, %s29
    %s35 = ssub.s32 %s21, %s33
    %s36 = sor.u32 %s34, %s35
    %p37 = scmp.eq.s32.totalorder %s36, 0
    %s39 = sadd.s32 %s38, 1
    %s40 = scalar_select %p37, %s38, %s39
    %p43 = pneg %p37
    %p44 = scmp.eq.s32.totalorder %s14, 2
    %p45 = por %p43, %p44
    %p46 = scmp.ne.s32.totalorder %s38, %s41
    %p47 = scmp.eq.s32.totalorder %s14, 0
    %p48 = por %p46, %p47
    %p49 = scmp.ne.s32.totalorder %s38, %s41
    %p50 = scmp.eq.s32.totalorder %s19, 2
    %p51 = por %p49, %p50
    %p52 = scmp.ne.s32.totalorder %s41, %s42
    %p53 = scmp.eq.s32.totalorder %s19, 0
    %p54 = por %p52, %p53
    %p55 = scmp.ne.s32.totalorder %s41, %s42
    %p56 = scmp.eq.s32.totalorder %s20, 2
    %p57 = por %p55, %p56
    %p59 = scmp.ne.s32.totalorder %s42, %s58
    %p60 = scmp.eq.s32.totalorder %s20, 0
    %p61 = por %p59, %p60
    %s62 = ssub.s32 %s21, %s33
    %p63 = scmp.eq.s32.totalorder %s62, 0
    %s65 = sadd.s32 %s64, 1
    %s66 = scalar_select %p63, %s64, %s65
    %p69 = pneg %p63
    %p70 = scmp.eq.s32.totalorder %s14, 2
    %p71 = por %p69, %p70
    %p72 = scmp.ne.s32.totalorder %s64, %s67
    %p73 = scmp.eq.s32.totalorder %s14, 0
    %p74 = por %p72, %p73
    %p75 = scmp.ne.s32.totalorder %s64, %s67
    %p76 = scmp.eq.s32.totalorder %s19, 2
    %p77 = por %p75, %p76
    %p78 = scmp.ne.s32.totalorder %s67, %s68
    %p79 = scmp.eq.s32.totalorder %s19, 0
    %p80 = por %p78, %p79
    %p81 = scmp.ne.s32.totalorder %s67, %s68
    %p82 = scmp.eq.s32.totalorder %s20, 2
    %p83 = por %p81, %p82
    %p85 = scmp.ne.s32.totalorder %s68, %s84
    %p86 = scmp.eq.s32.totalorder %s20, 0
    %p87 = por %p85, %p86
    %s89 = sadd.s32 %s88, 1
    %p92 = scmp.eq.s32.totalorder %s14, 2
    %p93 = scmp.ne.s32.totalorder %s88, %s90
    %p94 = scmp.eq.s32.totalorder %s14, 0
    %p95 = por %p93, %p94
    %p96 = scmp.ne.s32.totalorder %s88, %s90
    %p97 = scmp.eq.s32.totalorder %s19, 2
    %p98 = por %p96, %p97
    %p99 = scmp.ne.s32.totalorder %s90, %s91
    %p100 = scmp.eq.s32.totalorder %s19, 0
    %p101 = por %p99, %p100
    %p102 = scmp.ne.s32.totalorder %s90, %s91
    %p103 = scmp.eq.s32.totalorder %s20, 2
    %p104 = por %p102, %p103
    %p106 = scmp.ne.s32.totalorder %s91, %s105
    %p107 = scmp.eq.s32.totalorder %s20, 0
    %p108 = por %p106, %p107
    %s110 = sadd.s32 %s109, 1
    %p113 = scmp.eq.s32.totalorder %s14, 2
    %p114 = scmp.ne.s32.totalorder %s109, %s111
    %p115 = scmp.eq.s32.totalorder %s14, 0
    %p116 = por %p114, %p115
    %p117 = scmp.ne.s32.totalorder %s109, %s111
    %p118 = scmp.eq.s32.totalorder %s19, 2
    %p119 = por %p117, %p118
    %p120 = scmp.ne.s32.totalorder %s111, %s112
    %p121 = scmp.eq.s32.totalorder %s19, 0
    %p122 = por %p120, %p121
    %p123 = scmp.ne.s32.totalorder %s111, %s112
    %p124 = scmp.eq.s32.totalorder %s20, 2
    %p125 = por %p123, %p124
    %p127 = scmp.ne.s32.totalorder %s112, %s126
    %p128 = scmp.eq.s32.totalorder %s20, 0
    %p129 = por %p127, %p128
    %s130 = ssub.s32 %s22, %s29
    %p131 = scmp.eq.s32.totalorder %s130, 0
    %s133 = sadd.s32 %s132, 1
    %s134 = scalar_select %p131, %s132, %s133
    %p137 = pneg %p131
    %p138 = scmp.eq.s32.totalorder %s14, 2
    %p139 = por %p137, %p138
    %p140 = scmp.ne.s32.totalorder %s132, %s135
    %p141 = scmp.eq.s32.totalorder %s14, 0
    %p142 = por %p140, %p141
    %p143 = scmp.ne.s32.totalorder %s132, %s135
    %p144 = scmp.eq.s32.totalorder %s19, 2
    %p145 = por %p143, %p144
    %p146 = scmp.ne.s32.totalorder %s135, %s136
    %p147 = scmp.eq.s32.totalorder %s19, 0
    %p148 = por %p146, %p147
    %p149 = scmp.ne.s32.totalorder %s135, %s136
    %p150 = scmp.eq.s32.totalorder %s20, 2
    %p151 = por %p149, %p150
    %p153 = scmp.ne.s32.totalorder %s136, %s152
    %p154 = scmp.eq.s32.totalorder %s20, 0
    %p155 = por %p153, %p154
    %s156 = ssub.s32 %s22, %s29
    %p157 = scmp.eq.s32.totalorder %s156, 0
    %s159 = sadd.s32 %s158, 1
    %s160 = scalar_select %p157, %s158, %s159
    %p163 = pneg %p157
    %p164 = scmp.eq.s32.totalorder %s14, 2
    %p165 = por %p163, %p164
    %p166 = scmp.ne.s32.totalorder %s158, %s161
    %p167 = scmp.eq.s32.totalorder %s14, 0
    %p168 = por %p166, %p167
    %p169 = scmp.ne.s32.totalorder %s158, %s161
    %p170 = scmp.eq.s32.totalorder %s19, 2
    %p171 = por %p169, %p170
    %p172 = scmp.ne.s32.totalorder %s161, %s162
    %p173 = scmp.eq.s32.totalorder %s19, 0
    %p174 = por %p172, %p173
    %p175 = scmp.ne.s32.totalorder %s161, %s162
    %p176 = scmp.eq.s32.totalorder %s20, 2
    %p177 = por %p175, %p176
    %p179 = scmp.ne.s32.totalorder %s162, %s178
    %p180 = scmp.eq.s32.totalorder %s20, 0
    %p181 = por %p179, %p180
    %s182 = ssub.s32 %s22, %s29
    %p183 = scmp.eq.s32.totalorder %s182, 0
    %s185 = sadd.s32 %s184, 1
    %s186 = scalar_select %p183, %s184, %s185
    %p189 = pneg %p183
    %p190 = scmp.eq.s32.totalorder %s14, 2
    %p191 = por %p189, %p190
    %p192 = scmp.ne.s32.totalorder %s184, %s187
    %p193 = scmp.eq.s32.totalorder %s14, 0
    %p194 = por %p192, %p193
    %p195 = scmp.ne.s32.totalorder %s184, %s187
    %p196 = scmp.eq.s32.totalorder %s19, 2
    %p197 = por %p195, %p196
    %p198 = scmp.ne.s32.totalorder %s187, %s188
    %p199 = scmp.eq.s32.totalorder %s19, 0
    %p200 = por %p198, %p199
    %p201 = scmp.ne.s32.totalorder %s187, %s188
    %p202 = scmp.eq.s32.totalorder %s20, 2
    %p203 = por %p201, %p202
    %p205 = scmp.ne.s32.totalorder %s188, %s204
    %p206 = scmp.eq.s32.totalorder %s20, 0
    %p207 = por %p205, %p206
    %s208 = ssub.s32 %s22, %s29
    %p209 = scmp.eq.s32.totalorder %s208, 0
    %s211 = sadd.s32 %s210, 1
    %s212 = scalar_select %p209, %s210, %s211
    %p215 = pneg %p209
    %p216 = scmp.eq.s32.totalorder %s14, 2
    %p217 = por %p215, %p216
    %p218 = scmp.ne.s32.totalorder %s210, %s213
    %p219 = scmp.eq.s32.totalorder %s14, 0
    %p220 = por %p218, %p219
    %p221 = scmp.ne.s32.totalorder %s210, %s213
    %p222 = scmp.eq.s32.totalorder %s19, 2
    %p223 = por %p221, %p222
    %p224 = scmp.ne.s32.totalorder %s213, %s214
    %p225 = scmp.eq.s32.totalorder %s19, 0
    %p226 = por %p224, %p225
    %p227 = scmp.ne.s32.totalorder %s213, %s214
    %p228 = scmp.eq.s32.totalorder %s20, 2
    %p229 = por %p227, %p228
    %p231 = scmp.ne.s32.totalorder %s214, %s230
    %p232 = scmp.eq.s32.totalorder %s20, 0
    %p233 = por %p231, %p232
    %s234 = ssub.s32 %s21, %s33
    %p235 = scmp.eq.s32.totalorder %s234, 0
    %s237 = sadd.s32 %s236, 1
    %s238 = scalar_select %p235, %s236, %s237
    %p241 = pneg %p235
    %p242 = scmp.eq.s32.totalorder %s14, 2
    %p243 = por %p241, %p242
    %p244 = scmp.ne.s32.totalorder %s236, %s239
    %p245 = scmp.eq.s32.totalorder %s14, 0
    %p246 = por %p244, %p245
    %p247 = scmp.ne.s32.totalorder %s236, %s239
    %p248 = scmp.eq.s32.totalorder %s19, 2
    %p249 = por %p247, %p248
    %p250 = scmp.ne.s32.totalorder %s239, %s240
    %p251 = scmp.eq.s32.totalorder %s19, 0
    %p252 = por %p250, %p251
    %p253 = scmp.ne.s32.totalorder %s239, %s240
    %p254 = scmp.eq.s32.totalorder %s20, 2
    %p255 = por %p253, %p254
    %p257 = scmp.ne.s32.totalorder %s240, %s256
    %p258 = scmp.eq.s32.totalorder %s20, 0
    %p259 = por %p257, %p258
    %p260 = scmp.le.s32.totalorder 1, %s14
    %p261 = scmp.lt.s32.totalorder %s14, 4
    %p262 = pnand %p260, %p261
    %p263 = pneg %p262
    // Predicated region
    $region9: #{rgin_conv.3} parent=5 // pred_check
      _
    $region10: #{rgin_conv.3} parent=5 // pred_check_branch
      %265 = sbr.rel (%p262) target = $region12
    $region11: #{rgin_conv.3} parent=5 // pred_region
      %s266 = ssub.s32 %s14, 1
      // Predicated region
      $region13: #{rgin_conv.3} parent=11 // pred_check
        %p267 = pneg %p80
      $region14: #{rgin_conv.3} parent=11 // pred_check_branch
        %269 = sbr.rel (%p267) target = $region16
      $region15: #{rgin_conv.3} parent=11 // pred_region
        %s270 = smul.u32 16, %s23
        %p271 = scmp.lt.s32.totalorder %s270, 15
        %s272 = scalar_select %p271, %s270, 15
        %s273 = smul.addr %s272, 4
        %s274 = scalar_lea.vmem %s1, %s273
        %s275 = smul.u32 16, %s23
      $region16: #{rgin_conv.3} parent=11 // pred_fallthru
        _
      // Predicated region
      $region17: #{rgin_conv.3} parent=11 // pred_check
        %p276 = pneg %p101
      $region18: #{rgin_conv.3} parent=11 // pred_check_branch
        %278 = sbr.rel (%p276) target = $region20
      $region19: #{rgin_conv.3} parent=11 // pred_region
        _
      $region20: #{rgin_conv.3} parent=11 // pred_fallthru
        _
      // Predicated region
      $region21: #{rgin_conv.3} parent=11 // pred_check
        %p279 = pneg %p122
      $region22: #{rgin_conv.3} parent=11 // pred_check_branch
        %281 = sbr.rel (%p279) target = $region24
      $region23: #{rgin_conv.3} parent=11 // pred_region
        _
      $region24: #{rgin_conv.3} parent=11 // pred_fallthru
        _
    $region12: #{rgin_conv.3} parent=5 // pred_fallthru
      _
    %p282 = scmp.lt.s32.totalorder %s14, 3
    // Predicated region
    $region25: #{rgin_conv.3} parent=5 // pred_check
      %p283 = pneg %p282
    $region26: #{rgin_conv.3} parent=5 // pred_check_branch
      %285 = sbr.rel (%p283) target = $region28
    $region27: #{rgin_conv.3} parent=5 // pred_region
      // Predicated region
      $region29: #{rgin_conv.3} parent=27 // pred_check
        %p286 = pneg %p48
      $region30: #{rgin_conv.3} parent=27 // pred_check_branch
        %288 = sbr.rel (%p286) target = $region32
      $region31: #{rgin_conv.3} parent=27 // pred_region
        %s289 = smul.u32 16, %s21
        %p290 = scmp.lt.s32.totalorder %s22, 2
        %s291 = scalar_select %p290, %s22, 2
        %p292 = scmp.lt.s32.totalorder %s289, 15
        %s293 = scalar_select %p292, %s289, 15
        %s294 = smul.addr %s291, 16
        %s295 = sadd.s32 %s293, %s294
        %s296 = smul.addr %s295, 8
        %s297 = scalar_lea.vmem %s0, %s296
        %s298 = smul.u32 16, %s21
      $region32: #{rgin_conv.3} parent=27 // pred_fallthru
        _
      // Predicated region
      $region33: #{rgin_conv.3} parent=27 // pred_check
        %p299 = pneg %p142
      $region34: #{rgin_conv.3} parent=27 // pred_check_branch
        %301 = sbr.rel (%p299) target = $region36
      $region35: #{rgin_conv.3} parent=27 // pred_region
        %p302 = scmp.lt.s32.totalorder %s22, 2
        %s303 = scalar_select %p302, %s22, 2
        %s304 = scalar_lea.vmem %s4, %s303
      $region36: #{rgin_conv.3} parent=27 // pred_fallthru
        _
      // Predicated region
      $region37: #{rgin_conv.3} parent=27 // pred_check
        %p305 = pneg %p168
      $region38: #{rgin_conv.3} parent=27 // pred_check_branch
        %307 = sbr.rel (%p305) target = $region40
      $region39: #{rgin_conv.3} parent=27 // pred_region
        %p308 = scmp.lt.s32.totalorder %s22, 2
        %s309 = scalar_select %p308, %s22, 2
        %s310 = scalar_lea.vmem %s5, %s309
      $region40: #{rgin_conv.3} parent=27 // pred_fallthru
        _
      // Predicated region
      $region41: #{rgin_conv.3} parent=27 // pred_check
        %p311 = pneg %p194
      $region42: #{rgin_conv.3} parent=27 // pred_check_branch
        %313 = sbr.rel (%p311) target = $region44
      $region43: #{rgin_conv.3} parent=27 // pred_region
        %p314 = scmp.lt.s32.totalorder %s22, 2
        %s315 = scalar_select %p314, %s22, 2
        %s316 = smul.addr %s315, 16
        %s317 = smul.addr %s316, 4
        %s318 = scalar_lea.vmem %s6, %s317
      $region44: #{rgin_conv.3} parent=27 // pred_fallthru
        _
      // Predicated region
      $region45: #{rgin_conv.3} parent=27 // pred_check
        %p319 = pneg %p220
      $region46: #{rgin_conv.3} parent=27 // pred_check_branch
        %321 = sbr.rel (%p319) target = $region48
      $region47: #{rgin_conv.3} parent=27 // pred_region
        %p322 = scmp.lt.s32.totalorder %s22, 2
        %s323 = scalar_select %p322, %s22, 2
        %s324 = scalar_lea.vmem %s7, %s323
      $region48: #{rgin_conv.3} parent=27 // pred_fallthru
        _
    $region28: #{rgin_conv.3} parent=5 // pred_fallthru
      _
    %p325 = scmp.le.s32.totalorder 1, %s14
    %p326 = scmp.lt.s32.totalorder %s14, 4
    %p327 = pnand %p325, %p326
    %p328 = pneg %p327
    // Predicated region
    $region49: #{rgin_conv.3} parent=5 // pred_check
      _
    $region50: #{rgin_conv.3} parent=5 // pred_check_branch
      %330 = sbr.rel (%p327) target = $region52
    $region51: #{rgin_conv.3} parent=5 // pred_region
      %s331 = ssub.s32 %s14, 1
      %s332 = smul.u32 16, %s23
      %p333 = scmp.lt.s32.totalorder %s24, 2
      %s334 = scalar_select %p333, %s24, 2
      %p335 = scmp.lt.s32.totalorder %s332, 15
      %s336 = scalar_select %p335, %s332, 15
      %s337 = smul.addr %s334, 16
      %s338 = sadd.s32 %s336, %s337
      %s339 = smul.addr %s338, 8
      %s340 = scalar_lea.vmem %s0, %s339
      %p341 = pneg %p54
      %p342 = pneg %p51
      %s343 = smul.u32 16, %s23
      %p344 = scmp.lt.s32.totalorder %s343, 15
      %s345 = scalar_select %p344, %s343, 15
      %s346 = smul.addr %s345, 4
      %s347 = scalar_lea.vmem %s1, %s346
      %p348 = pneg %p80
      %p349 = pneg %p77
      %p350 = pneg %p101
      %p351 = pneg %p98
      %p352 = pneg %p122
      %p353 = pneg %p119
      %p354 = scmp.lt.s32.totalorder %s24, 2
      %s355 = scalar_select %p354, %s24, 2
      %s356 = scalar_lea.vmem %s4, %s355
      %p357 = pneg %p148
      %p358 = pneg %p145
      %p359 = scmp.lt.s32.totalorder %s24, 2
      %s360 = scalar_select %p359, %s24, 2
      %s361 = scalar_lea.vmem %s5, %s360
      %p362 = pneg %p174
      %p363 = pneg %p171
      %p364 = scmp.lt.s32.totalorder %s24, 2
      %s365 = scalar_select %p364, %s24, 2
      %s366 = smul.addr %s365, 16
      %s367 = smul.addr %s366, 4
      %s368 = scalar_lea.vmem %s6, %s367
      %p369 = pneg %p200
      %p370 = pneg %p197
      %p371 = scmp.lt.s32.totalorder %s24, 2
      %s372 = scalar_select %p371, %s24, 2
      %s373 = scalar_lea.vmem %s7, %s372
      %p374 = pneg %p226
      %p375 = pneg %p223
      %p376 = pneg %p252
      %p377 = pneg %p249
      %s378 = smul.u32 16, %s23
      %p379 = scmp.lt.s32.totalorder %s378, 15
      %s380 = scalar_select %p379, %s378, 15
      %s381 = smul.addr %s380, 8
      %s382 = scalar_lea.vmem %s8, %s381
      %s383 = smul.u32 16, %s23
      %p384 = scmp.lt.s32.totalorder %s24, 2
      %s385 = scalar_select %p384, %s24, 2
      %p386 = scmp.lt.s32.totalorder %s383, 15
      %s387 = scalar_select %p386, %s383, 15
      %s388 = smul.addr %s385, 16
      %s389 = sadd.s32 %s387, %s388
      %s390 = smul.addr %s389, 8
      %s391 = scalar_lea.vmem %s0, %s390
      %s392 = smul.u32 16, %s23
      %s393 = smul.u32 16, %s23
      %p394 = scmp.lt.s32.totalorder %s393, 15
      %s395 = scalar_select %p394, %s393, 15
      %s396 = smul.addr %s395, 4
      %s397 = scalar_lea.vmem %s1, %s396
      %s398 = smul.u32 16, %s23
      %p399 = scmp.lt.s32.totalorder %s24, 2
      %s400 = scalar_select %p399, %s24, 2
      %s401 = scalar_lea.vmem %s4, %s400
      %p402 = scmp.lt.s32.totalorder %s24, 2
      %s403 = scalar_select %p402, %s24, 2
      %s404 = scalar_lea.vmem %s5, %s403
      %p405 = scmp.lt.s32.totalorder %s24, 2
      %s406 = scalar_select %p405, %s24, 2
      %s407 = smul.addr %s406, 16
      %s408 = smul.addr %s407, 4
      %s409 = scalar_lea.vmem %s6, %s408
      %p410 = scmp.lt.s32.totalorder %s24, 2
      %s411 = scalar_select %p410, %s24, 2
      %s412 = scalar_lea.vmem %s7, %s411
      %s413 = smul.u32 16, %s23
      %p414 = scmp.lt.s32.totalorder %s413, 15
      %s415 = scalar_select %p414, %s413, 15
      %s416 = smul.addr %s415, 8
      %s417 = scalar_lea.vmem %s8, %s416
      %s418 = smul.u32 16, %s23
      %p420 = scmp.eq.s32.totalorder %s24, 0
      // Predicated region
      $region53: #{rgin_conv.3} parent=51 // pred_check
        %p421 = pneg %p420
      $region54: #{rgin_conv.3} parent=51 // pred_check_branch
        %423 = sbr.rel (%p421) target = $region56
      $region55: #{rgin_conv.3} parent=51 // pred_region
        %v424 = vld [vmem:[%s397] sm:$0xf]
        %v425 = vld [vmem:[%s397 + $0x4] sm:$0xf]
        %v426 = vld [vmem:[%s397 + $0x8] sm:$0xf]
        %v427 = vld [vmem:[%s397 + $0xc] sm:$0xf]
        %v428 = vld [vmem:[%s397 + $0x10] sm:$0xf]
        %v429 = vld [vmem:[%s397 + $0x14] sm:$0xf]
        %v430 = vld [vmem:[%s397 + $0x18] sm:$0xf]
        %v431 = vld [vmem:[%s397 + $0x1c] sm:$0xf]
        %v432 = vld [vmem:[%s397 + $0x20] sm:$0xf]
        %v433 = vld [vmem:[%s397 + $0x24] sm:$0xf]
        %v434 = vld [vmem:[%s397 + $0x28] sm:$0xf]
        %v435 = vld [vmem:[%s397 + $0x2c] sm:$0xf]
        %v436 = vld [vmem:[%s397 + $0x30] sm:$0xf]
        %v437 = vld [vmem:[%s397 + $0x34] sm:$0xf]
        %v438 = vld [vmem:[%s397 + $0x38] sm:$0xf]
        %v439 = vld [vmem:[%s397 + $0x3c] sm:$0xf]
        %v440 = vld [vmem:[%s2] sm:$0xf]
        %v441 = vld [vmem:[%s2 + $0x4] sm:$0xf]
        %v442 = vld [vmem:[%s2 + $0x8] sm:$0xf]
        %v443 = vld [vmem:[%s2 + $0xc] sm:$0xf]
        %v444 = vld [vmem:[%s2 + $0x10] sm:$0xf]
        %v445 = vld [vmem:[%s2 + $0x14] sm:$0xf]
        %v446 = vld [vmem:[%s2 + $0x18] sm:$0xf]
        %v447 = vld [vmem:[%s2 + $0x1c] sm:$0xf]
        %v448 = vld [vmem:[%s2 + $0x20] sm:$0xf]
        %v449 = vld [vmem:[%s2 + $0x24] sm:$0xf]
        %v450 = vld [vmem:[%s2 + $0x28] sm:$0xf]
        %v451 = vld [vmem:[%s2 + $0x2c] sm:$0xf]
        %v452 = vld [vmem:[%s2 + $0x30] sm:$0xf]
        %v453 = vld [vmem:[%s2 + $0x34] sm:$0xf]
        %v454 = vld [vmem:[%s2 + $0x38] sm:$0xf]
        %v455 = vld [vmem:[%s2 + $0x3c] sm:$0xf]
        %v456 = vld [vmem:[%s3] sm:$0x1]
        %v458 = vlaneseq
        %v459 = vshrl.u32 %v458, 7
        %v460 = vsub.s32 0, %v459
        %v461 = vrot.slane %v456, %v460
        %v479 = vunpack.c.l.b16 %v424
        %v480 = vunpack.c.l.b16 %v425
        %v481 = vunpack.c.l.b16 %v426
        %v482 = vunpack.c.l.b16 %v427
        %v483 = vunpack.c.l.b16 %v428
        %v484 = vunpack.c.l.b16 %v429
        %v485 = vunpack.c.l.b16 %v430
        %v486 = vunpack.c.l.b16 %v431
        %v487 = vunpack.c.l.b16 %v432
        %v488 = vunpack.c.l.b16 %v433
        %v489 = vunpack.c.l.b16 %v434
        %v490 = vunpack.c.l.b16 %v435
        %v491 = vunpack.c.l.b16 %v436
        %v492 = vunpack.c.l.b16 %v437
        %v493 = vunpack.c.l.b16 %v438
        %v494 = vunpack.c.l.b16 %v439
        %v495 = vpack.c.b16 %v480, %v479
        %v496 = vpack.c.b16 %v482, %v481
        %v497 = vpack.c.b16 %v484, %v483
        %v498 = vpack.c.b16 %v486, %v485
        %v499 = vpack.c.b16 %v488, %v487
        %v500 = vpack.c.b16 %v490, %v489
        %v501 = vpack.c.b16 %v492, %v491
        %v502 = vpack.c.b16 %v494, %v493
        %v527 = vunpack.c.l.b16 %v440
        %v528 = vunpack.c.l.b16 %v441
        %v529 = vunpack.c.l.b16 %v442
        %v530 = vunpack.c.l.b16 %v443
        %v531 = vunpack.c.l.b16 %v444
        %v532 = vunpack.c.l.b16 %v445
        %v533 = vunpack.c.l.b16 %v446
        %v534 = vunpack.c.l.b16 %v447
        %v535 = vunpack.c.l.b16 %v448
        %v536 = vunpack.c.l.b16 %v449
        %v537 = vunpack.c.l.b16 %v450
        %v538 = vunpack.c.l.b16 %v451
        %v539 = vunpack.c.l.b16 %v452
        %v540 = vunpack.c.l.b16 %v453
        %v541 = vunpack.c.l.b16 %v454
        %v542 = vunpack.c.l.b16 %v455
        %v543 = vpack.c.b16 %v528, %v527
        %v544 = vpack.c.b16 %v530, %v529
        %v545 = vpack.c.b16 %v532, %v531
        %v546 = vpack.c.b16 %v534, %v533
        %v547 = vpack.c.b16 %v536, %v535
        %v548 = vpack.c.b16 %v538, %v537
        %v549 = vpack.c.b16 %v540, %v539
        %v550 = vpack.c.b16 %v542, %v541
        %559 = vmatprep.subr.bf16.mxu0 0
        %560 = vmatpush1.bf16.msra.mxu0 %v543
        %561 = vmatprep.subr.bf16.mxu0 0
        %562 = vmatpush1.bf16.msra.mxu0 %v544
        %563 = vmatprep.subr.bf16.mxu0 0
        %564 = vmatpush1.bf16.msra.mxu0 %v545
        %565 = vmatprep.subr.bf16.mxu0 0
        %566 = vmatpush1.bf16.msra.mxu0 %v546
        %567 = vmatprep.subr.bf16.mxu0 0
        %568 = vmatpush1.bf16.msra.mxu0 %v547
        %569 = vmatprep.subr.bf16.mxu0 0
        %570 = vmatpush1.bf16.msra.mxu0 %v548
        %571 = vmatprep.subr.bf16.mxu0 0
        %572 = vmatpush1.bf16.msra.mxu0 %v549
        %573 = vmatprep.subr.bf16.mxu0 0
        %574 = vmatpush1.bf16.msra.mxu0 %v550
        %575 = vmatprep.subr.bf16.mxu0 0
        %576 = vmatpush1.bf16.msra.mxu0 0
        %577 = vmatprep.subr.bf16.mxu0 0
        %578 = vmatpush1.bf16.msra.mxu0 0
        %579 = vmatprep.subr.bf16.mxu0 0
        %580 = vmatpush1.bf16.msra.mxu0 0
        %581 = vmatprep.subr.bf16.mxu0 0
        %582 = vmatpush1.bf16.msra.mxu0 0
        %583 = vmatprep.subr.bf16.mxu0 0
        %584 = vmatpush1.bf16.msra.mxu0 0
        %585 = vmatprep.subr.bf16.mxu0 0
        %586 = vmatpush1.bf16.msra.mxu0 0
        %587 = vmatprep.subr.bf16.mxu0 0
        %588 = vmatpush1.bf16.msra.mxu0 0
        %589 = vmatprep.subr.bf16.mxu0 0
        %590 = vmatpush1.bf16.msra.mxu0 0
        %591 = vmatprep.mubr.bf16.mxu0 0
        %592 = vmatmul.mubr.bf16.gmra.mrb[0].mxu0 %v495
        %v593 = vpop.f32.mrb[0].mxu0
        %v594 = vadd.f32 %v461, %v593
        %v595 = vpop.f32.mrb[0].mxu0
        %v596 = vpop.f32.mrb[0].mxu0
        %v597 = vadd.f32 %v461, %v596
        %v598 = vpop.f32.mrb[0].mxu0
        %599 = vmatprep.mubr.bf16.mxu0 0
        %600 = vmatmul.mubr.bf16.gmra.mrb[0].mxu0 %v496
        %v601 = vpop.f32.mrb[0].mxu0
        %v602 = vadd.f32 %v461, %v601
        %v603 = vpop.f32.mrb[0].mxu0
        %v604 = vpop.f32.mrb[0].mxu0
        %v605 = vadd.f32 %v461, %v604
        %v606 = vpop.f32.mrb[0].mxu0
        %607 = vmatprep.mubr.bf16.mxu0 0
        %608 = vmatmul.mubr.bf16.gmra.mrb[0].mxu0 %v497
        %v609 = vpop.f32.mrb[0].mxu0
        %v610 = vadd.f32 %v461, %v609
        %v611 = vpop.f32.mrb[0].mxu0
        %v612 = vpop.f32.mrb[0].mxu0
        %v613 = vadd.f32 %v461, %v612
        %v614 = vpop.f32.mrb[0].mxu0
        %615 = vmatprep.mubr.bf16.mxu0 0
        %616 = vmatmul.mubr.bf16.gmra.mrb[0].mxu0 %v498
        %v617 = vpop.f32.mrb[0].mxu0
        %v618 = vadd.f32 %v461, %v617
        %v619 = vpop.f32.mrb[0].mxu0
        %v620 = vpop.f32.mrb[0].mxu0
        %v621 = vadd.f32 %v461, %v620
        %v622 = vpop.f32.mrb[0].mxu0
        %623 = vmatprep.mubr.bf16.mxu0 0
        %624 = vmatmul.mubr.bf16.gmra.mrb[0].mxu0 %v499
        %v625 = vpop.f32.mrb[0].mxu0
        %v626 = vadd.f32 %v461, %v625
        %v627 = vpop.f32.mrb[0].mxu0
        %v628 = vpop.f32.mrb[0].mxu0
        %v629 = vadd.f32 %v461, %v628
        %v630 = vpop.f32.mrb[0].mxu0
        %631 = vmatprep.mubr.bf16.mxu0 0
        %632 = vmatmul.mubr.bf16.gmra.mrb[0].mxu0 %v500
        %v633 = vpop.f32.mrb[0].mxu0
        %v634 = vadd.f32 %v461, %v633
        %v635 = vpop.f32.mrb[0].mxu0
        %v636 = vpop.f32.mrb[0].mxu0
        %v637 = vadd.f32 %v461, %v636
        %v638 = vpop.f32.mrb[0].mxu0
        %639 = vmatprep.mubr.bf16.mxu0 0
        %640 = vmatmul.mubr.bf16.gmra.mrb[0].mxu0 %v501
        %v641 = vpop.f32.mrb[0].mxu0
        %v642 = vadd.f32 %v461, %v641
        %v643 = vpop.f32.mrb[0].mxu0
        %v644 = vpop.f32.mrb[0].mxu0
        %v645 = vadd.f32 %v461, %v644
        %v646 = vpop.f32.mrb[0].mxu0
        %647 = vmatprep.mubr.bf16.mxu0 0
        %648 = vmatmul.mubr.bf16.gmra.mrb[0].mxu0 %v502
        %v649 = vpop.f32.mrb[0].mxu0
        %v650 = vadd.f32 %v461, %v649
        %v651 = vpop.f32.mrb[0].mxu0
        %v652 = vpop.f32.mrb[0].mxu0
        %v653 = vadd.f32 %v461, %v652
        %v654 = vpop.f32.mrb[0].mxu0
        %655 = vdwg.mxu0
        %656 = vst [vmem:[#allocation2] sm:$0xff] %v594
        %657 = vst [vmem:[#allocation2 + $0x8] sm:$0xff] %v597
        %658 = vst [vmem:[#allocation2 + $0x10] sm:$0xff] %v602
        %659 = vst [vmem:[#allocation2 + $0x18] sm:$0xff] %v605
        %660 = vst [vmem:[#allocation2 + $0x20] sm:$0xff] %v610
        %661 = vst [vmem:[#allocation2 + $0x28] sm:$0xff] %v613
        %662 = vst [vmem:[#allocation2 + $0x30] sm:$0xff] %v618
        %663 = vst [vmem:[#allocation2 + $0x38] sm:$0xff] %v621
        %664 = vst [vmem:[#allocation2 + $0x40] sm:$0xff] %v626
        %665 = vst [vmem:[#allocation2 + $0x48] sm:$0xff] %v629
        %666 = vst [vmem:[#allocation2 + $0x50] sm:$0xff] %v634
        %667 = vst [vmem:[#allocation2 + $0x58] sm:$0xff] %v637
        %668 = vst [vmem:[#allocation2 + $0x60] sm:$0xff] %v642
        %669 = vst [vmem:[#allocation2 + $0x68] sm:$0xff] %v645
        %670 = vst [vmem:[#allocation2 + $0x70] sm:$0xff] %v650
        %671 = vst [vmem:[#allocation2 + $0x78] sm:$0xff] %v653
      $region56: #{rgin_conv.3} parent=51 // pred_fallthru
        _
      %v672 = vld [vmem:[%s391] sm:$0xff]
      %v673 = vld [vmem:[%s391 + $0x8] sm:$0xff]
      %v674 = vld [vmem:[%s391 + $0x10] sm:$0xff]
      %v675 = vld [vmem:[%s391 + $0x18] sm:$0xff]
      %v676 = vld [vmem:[%s391 + $0x20] sm:$0xff]
      %v677 = vld [vmem:[%s391 + $0x28] sm:$0xff]
      %v678 = vld [vmem:[%s391 + $0x30] sm:$0xff]
      %v679 = vld [vmem:[%s391 + $0x38] sm:$0xff]
      %v680 = vld [vmem:[%s391 + $0x40] sm:$0xff]
      %v681 = vld [vmem:[%s391 + $0x48] sm:$0xff]
      %v682 = vld [vmem:[%s391 + $0x50] sm:$0xff]
      %v683 = vld [vmem:[%s391 + $0x58] sm:$0xff]
      %v684 = vld [vmem:[%s391 + $0x60] sm:$0xff]
      %v685 = vld [vmem:[%s391 + $0x68] sm:$0xff]
      %v686 = vld [vmem:[%s391 + $0x70] sm:$0xff]
      %v687 = vld [vmem:[%s391 + $0x78] sm:$0xff]
      %v688 = vld [vmem:[%s401] sm:$0x1]
      %v690 = vlaneseq
      %v691 = vshrl.u32 %v690, 7
      %v692 = vsub.s32 0, %v691
      %v693 = vrot.slane %v688, %v692
      %v695 = vmul.f32 %v672, %v693
      %v696 = vmul.f32 %v673, %v693
      %v697 = vmul.f32 %v674, %v693
      %v698 = vmul.f32 %v675, %v693
      %v699 = vmul.f32 %v676, %v693
      %v700 = vmul.f32 %v677, %v693
      %v701 = vmul.f32 %v678, %v693
      %v702 = vmul.f32 %v679, %v693
      %v703 = vmul.f32 %v680, %v693
      %v704 = vmul.f32 %v681, %v693
      %v705 = vmul.f32 %v682, %v693
      %v706 = vmul.f32 %v683, %v693
      %v707 = vmul.f32 %v684, %v693
      %v708 = vmul.f32 %v685, %v693
      %v709 = vmul.f32 %v686, %v693
      %v710 = vmul.f32 %v687, %v693
      %v711 = vld [vmem:[%s404] sm:$0x1]
      %v713 = vlaneseq
      %v714 = vshrl.u32 %v713, 7
      %v715 = vsub.s32 0, %v714
      %v716 = vrot.slane %v711, %v715
      %v718 = vadd.f32 %v695, %v716
      %v719 = vadd.f32 %v696, %v716
      %v720 = vadd.f32 %v697, %v716
      %v721 = vadd.f32 %v698, %v716
      %v722 = vadd.f32 %v699, %v716
      %v723 = vadd.f32 %v700, %v716
      %v724 = vadd.f32 %v701, %v716
      %v725 = vadd.f32 %v702, %v716
      %v726 = vadd.f32 %v703, %v716
      %v727 = vadd.f32 %v704, %v716
      %v728 = vadd.f32 %v705, %v716
      %v729 = vadd.f32 %v706, %v716
      %v730 = vadd.f32 %v707, %v716
      %v731 = vadd.f32 %v708, %v716
      %v732 = vadd.f32 %v709, %v716
      %v733 = vadd.f32 %v710, %v716
      %v734 = vmax.f32 %v718, 0.0
      %v735 = vmax.f32 %v719, 0.0
      %v736 = vmax.f32 %v720, 0.0
      %v737 = vmax.f32 %v721, 0.0
      %v738 = vmax.f32 %v722, 0.0
      %v739 = vmax.f32 %v723, 0.0
      %v740 = vmax.f32 %v724, 0.0
      %v741 = vmax.f32 %v725, 0.0
      %v742 = vmax.f32 %v726, 0.0
      %v743 = vmax.f32 %v727, 0.0
      %v744 = vmax.f32 %v728, 0.0
      %v745 = vmax.f32 %v729, 0.0
      %v746 = vmax.f32 %v730, 0.0
      %v747 = vmax.f32 %v731, 0.0
      %v748 = vmax.f32 %v732, 0.0
      %v749 = vmax.f32 %v733, 0.0
      %v750 = vld [vmem:[#allocation2] sm:$0xff]
      %v751 = vld [vmem:[#allocation2 + $0x8] sm:$0xff]
      %v752 = vld [vmem:[#allocation2 + $0x10] sm:$0xff]
      %v753 = vld [vmem:[#allocation2 + $0x18] sm:$0xff]
      %v754 = vld [vmem:[#allocation2 + $0x20] sm:$0xff]
      %v755 = vld [vmem:[#allocation2 + $0x28] sm:$0xff]
      %v756 = vld [vmem:[#allocation2 + $0x30] sm:$0xff]
      %v757 = vld [vmem:[#allocation2 + $0x38] sm:$0xff]
      %v758 = vld [vmem:[#allocation2 + $0x40] sm:$0xff]
      %v759 = vld [vmem:[#allocation2 + $0x48] sm:$0xff]
      %v760 = vld [vmem:[#allocation2 + $0x50] sm:$0xff]
      %v761 = vld [vmem:[#allocation2 + $0x58] sm:$0xff]
      %v762 = vld [vmem:[#allocation2 + $0x60] sm:$0xff]
      %v763 = vld [vmem:[#allocation2 + $0x68] sm:$0xff]
      %v764 = vld [vmem:[#allocation2 + $0x70] sm:$0xff]
      %v765 = vld [vmem:[#allocation2 + $0x78] sm:$0xff]
      %v766 = vpack.c.bf16 %v735, %v734
      %v767 = vpack.c.bf16 %v737, %v736
      %v768 = vpack.c.bf16 %v739, %v738
      %v769 = vpack.c.bf16 %v741, %v740
      %v770 = vpack.c.bf16 %v743, %v742
      %v771 = vpack.c.bf16 %v745, %v744
      %v772 = vpack.c.bf16 %v747, %v746
      %v773 = vpack.c.bf16 %v749, %v748
      %v774 = vld [vmem:[%s409] sm:$0xf]
      %v775 = vld [vmem:[%s409 + $0x4] sm:$0xf]
      %v776 = vld [vmem:[%s409 + $0x8] sm:$0xf]
      %v777 = vld [vmem:[%s409 + $0xc] sm:$0xf]
      %v778 = vld [vmem:[%s409 + $0x10] sm:$0xf]
      %v779 = vld [vmem:[%s409 + $0x14] sm:$0xf]
      %v780 = vld [vmem:[%s409 + $0x18] sm:$0xf]
      %v781 = vld [vmem:[%s409 + $0x1c] sm:$0xf]
      %v782 = vld [vmem:[%s409 + $0x20] sm:$0xf]
      %v783 = vld [vmem:[%s409 + $0x24] sm:$0xf]
      %v784 = vld [vmem:[%s409 + $0x28] sm:$0xf]
      %v785 = vld [vmem:[%s409 + $0x2c] sm:$0xf]
      %v786 = vld [vmem:[%s409 + $0x30] sm:$0xf]
      %v787 = vld [vmem:[%s409 + $0x34] sm:$0xf]
      %v788 = vld [vmem:[%s409 + $0x38] sm:$0xf]
      %v789 = vld [vmem:[%s409 + $0x3c] sm:$0xf]
      %v790 = vld [vmem:[%s412] sm:$0x1]
      %v792 = vlaneseq
      %v793 = vshrl.u32 %v792, 7
      %v794 = vsub.s32 0, %v793
      %v795 = vrot.slane %v790, %v794
      %v813 = vunpack.c.l.b16 %v774
      %v814 = vunpack.c.l.b16 %v775
      %v815 = vunpack.c.l.b16 %v776
      %v816 = vunpack.c.l.b16 %v777
      %v817 = vunpack.c.l.b16 %v778
      %v818 = vunpack.c.l.b16 %v779
      %v819 = vunpack.c.l.b16 %v780
      %v820 = vunpack.c.l.b16 %v781
      %v821 = vunpack.c.l.b16 %v782
      %v822 = vunpack.c.l.b16 %v783
      %v823 = vunpack.c.l.b16 %v784
      %v824 = vunpack.c.l.b16 %v785
      %v825 = vunpack.c.l.b16 %v786
      %v826 = vunpack.c.l.b16 %v787
      %v827 = vunpack.c.l.b16 %v788
      %v828 = vunpack.c.l.b16 %v789
      %v829 = vpack.c.b16 %v814, %v813
      %v830 = vpack.c.b16 %v816, %v815
      %v831 = vpack.c.b16 %v818, %v817
      %v832 = vpack.c.b16 %v820, %v819
      %v833 = vpack.c.b16 %v822, %v821
      %v834 = vpack.c.b16 %v824, %v823
      %v835 = vpack.c.b16 %v826, %v825
      %v836 = vpack.c.b16 %v828, %v827
      %845 = vmatprep.subr.bf16.mxu0 0
      %846 = vmatpush1.bf16.msra.mxu0 %v829
      %847 = vmatprep.subr.bf16.mxu0 0
      %848 = vmatpush1.bf16.msra.mxu0 %v830
      %849 = vmatprep.subr.bf16.mxu0 0
      %850 = vmatpush1.bf16.msra.mxu0 %v831
      %851 = vmatprep.subr.bf16.mxu0 0
      %852 = vmatpush1.bf16.msra.mxu0 %v832
      %853 = vmatprep.subr.bf16.mxu0 0
      %854 = vmatpush1.bf16.msra.mxu0 %v833
      %855 = vmatprep.subr.bf16.mxu0 0
      %856 = vmatpush1.bf16.msra.mxu0 %v834
      %857 = vmatprep.subr.bf16.mxu0 0
      %858 = vmatpush1.bf16.msra.mxu0 %v835
      %859 = vmatprep.subr.bf16.mxu0 0
      %860 = vmatpush1.bf16.msra.mxu0 %v836
      %861 = vmatprep.subr.bf16.mxu0 0
      %862 = vmatpush1.bf16.msra.mxu0 0
      %863 = vmatprep.subr.bf16.mxu0 0
      %864 = vmatpush1.bf16.msra.mxu0 0
      %865 = vmatprep.subr.bf16.mxu0 0
      %866 = vmatpush1.bf16.msra.mxu0 0
      %867 = vmatprep.subr.bf16.mxu0 0
      %868 = vmatpush1.bf16.msra.mxu0 0
      %869 = vmatprep.subr.bf16.mxu0 0
      %870 = vmatpush1.bf16.msra.mxu0 0
      %871 = vmatprep.subr.bf16.mxu0 0
      %872 = vmatpush1.bf16.msra.mxu0 0
      %873 = vmatprep.subr.bf16.mxu0 0
      %874 = vmatpush1.bf16.msra.mxu0 0
      %875 = vmatprep.subr.bf16.mxu0 0
      %876 = vmatpush1.bf16.msra.mxu0 0
      %877 = vmatprep.mubr.bf16.mxu0 0
      %878 = vmatmul.mubr.bf16.gmra.mrb[0].mxu0 %v766
      %v879 = vpop.f32.mrb[0].mxu0
      %v880 = vadd.f32 %v795, %v879
      %v881 = vpop.f32.mrb[0].mxu0
      %v882 = vpop.f32.mrb[0].mxu0
      %v883 = vadd.f32 %v795, %v882
      %v884 = vpop.f32.mrb[0].mxu0
      %885 = vmatprep.mubr.bf16.mxu0 0
      %886 = vmatmul.mubr.bf16.gmra.mrb[0].mxu0 %v767
      %v887 = vpop.f32.mrb[0].mxu0
      %v888 = vadd.f32 %v795, %v887
      %v889 = vpop.f32.mrb[0].mxu0
      %v890 = vpop.f32.mrb[0].mxu0
      %v891 = vadd.f32 %v795, %v890
      %v892 = vpop.f32.mrb[0].mxu0
      %893 = vmatprep.mubr.bf16.mxu0 0
      %894 = vmatmul.mubr.bf16.gmra.mrb[0].mxu0 %v768
      %v895 = vpop.f32.mrb[0].mxu0
      %v896 = vadd.f32 %v795, %v895
      %v897 = vpop.f32.mrb[0].mxu0
      %v898 = vpop.f32.mrb[0].mxu0
      %v899 = vadd.f32 %v795, %v898
      %v900 = vpop.f32.mrb[0].mxu0
      %901 = vmatprep.mubr.bf16.mxu0 0
      %902 = vmatmul.mubr.bf16.gmra.mrb[0].mxu0 %v769
      %v903 = vpop.f32.mrb[0].mxu0
      %v904 = vadd.f32 %v795, %v903
      %v905 = vpop.f32.mrb[0].mxu0
      %v906 = vpop.f32.mrb[0].mxu0
      %v907 = vadd.f32 %v795, %v906
      %v908 = vpop.f32.mrb[0].mxu0
      %909 = vmatprep.mubr.bf16.mxu0 0
      %910 = vmatmul.mubr.bf16.gmra.mrb[0].mxu0 %v770
      %v911 = vpop.f32.mrb[0].mxu0
      %v912 = vadd.f32 %v795, %v911
      %v913 = vpop.f32.mrb[0].mxu0
      %v914 = vpop.f32.mrb[0].mxu0
      %v915 = vadd.f32 %v795, %v914
      %v916 = vpop.f32.mrb[0].mxu0
      %917 = vmatprep.mubr.bf16.mxu0 0
      %918 = vmatmul.mubr.bf16.gmra.mrb[0].mxu0 %v771
      %v919 = vpop.f32.mrb[0].mxu0
      %v920 = vadd.f32 %v795, %v919
      %v921 = vpop.f32.mrb[0].mxu0
      %v922 = vpop.f32.mrb[0].mxu0
      %v923 = vadd.f32 %v795, %v922
      %v924 = vpop.f32.mrb[0].mxu0
      %925 = vmatprep.mubr.bf16.mxu0 0
      %926 = vmatmul.mubr.bf16.gmra.mrb[0].mxu0 %v772
      %v927 = vpop.f32.mrb[0].mxu0
      %v928 = vadd.f32 %v795, %v927
      %v929 = vpop.f32.mrb[0].mxu0
      %v930 = vpop.f32.mrb[0].mxu0
      %v931 = vadd.f32 %v795, %v930
      %v932 = vpop.f32.mrb[0].mxu0
      %933 = vmatprep.mubr.bf16.mxu0 0
      %934 = vmatmul.mubr.bf16.gmra.mrb[0].mxu0 %v773
      %v935 = vpop.f32.mrb[0].mxu0
      %v936 = vadd.f32 %v795, %v935
      %v937 = vpop.f32.mrb[0].mxu0
      %v938 = vpop.f32.mrb[0].mxu0
      %v939 = vadd.f32 %v795, %v938
      %v940 = vpop.f32.mrb[0].mxu0
      %941 = vdwg.mxu0
      %v942 = vadd.f32 %v750, %v880
      %v943 = vadd.f32 %v751, %v883
      %v944 = vadd.f32 %v752, %v888
      %v945 = vadd.f32 %v753, %v891
      %v946 = vadd.f32 %v754, %v896
      %v947 = vadd.f32 %v755, %v899
      %v948 = vadd.f32 %v756, %v904
      %v949 = vadd.f32 %v757, %v907
      %v950 = vadd.f32 %v758, %v912
      %v951 = vadd.f32 %v759, %v915
      %v952 = vadd.f32 %v760, %v920
      %v953 = vadd.f32 %v761, %v923
      %v954 = vadd.f32 %v762, %v928
      %v955 = vadd.f32 %v763, %v931
      %v956 = vadd.f32 %v764, %v936
      %v957 = vadd.f32 %v765, %v939
      %958 = vst [vmem:[#allocation2] sm:$0xff] %v942
      %959 = vst [vmem:[#allocation2 + $0x8] sm:$0xff] %v943
      %960 = vst [vmem:[#allocation2 + $0x10] sm:$0xff] %v944
      %961 = vst [vmem:[#allocation2 + $0x18] sm:$0xff] %v945
      %962 = vst [vmem:[#allocation2 + $0x20] sm:$0xff] %v946
      %963 = vst [vmem:[#allocation2 + $0x28] sm:$0xff] %v947
      %964 = vst [vmem:[#allocation2 + $0x30] sm:$0xff] %v948
      %965 = vst [vmem:[#allocation2 + $0x38] sm:$0xff] %v949
      %966 = vst [vmem:[#allocation2 + $0x40] sm:$0xff] %v950
      %967 = vst [vmem:[#allocation2 + $0x48] sm:$0xff] %v951
      %968 = vst [vmem:[#allocation2 + $0x50] sm:$0xff] %v952
      %969 = vst [vmem:[#allocation2 + $0x58] sm:$0xff] %v953
      %970 = vst [vmem:[#allocation2 + $0x60] sm:$0xff] %v954
      %971 = vst [vmem:[#allocation2 + $0x68] sm:$0xff] %v955
      %972 = vst [vmem:[#allocation2 + $0x70] sm:$0xff] %v956
      %973 = vst [vmem:[#allocation2 + $0x78] sm:$0xff] %v957
      %p974 = scmp.eq.s32.totalorder %s24, 2
      // Predicated region
      $region57: #{rgin_conv.3} parent=51 // pred_check
        %p975 = pneg %p974
      $region58: #{rgin_conv.3} parent=51 // pred_check_branch
        %977 = sbr.rel (%p975) target = $region60
      $region59: #{rgin_conv.3} parent=51 // pred_region
        %v978 = vld [vmem:[#allocation2] sm:$0xff]
        %v979 = vld [vmem:[#allocation2 + $0x8] sm:$0xff]
        %v980 = vld [vmem:[#allocation2 + $0x10] sm:$0xff]
        %v981 = vld [vmem:[#allocation2 + $0x18] sm:$0xff]
        %v982 = vld [vmem:[#allocation2 + $0x20] sm:$0xff]
        %v983 = vld [vmem:[#allocation2 + $0x28] sm:$0xff]
        %v984 = vld [vmem:[#allocation2 + $0x30] sm:$0xff]
        %v985 = vld [vmem:[#allocation2 + $0x38] sm:$0xff]
        %v986 = vld [vmem:[#allocation2 + $0x40] sm:$0xff]
        %v987 = vld [vmem:[#allocation2 + $0x48] sm:$0xff]
        %v988 = vld [vmem:[#allocation2 + $0x50] sm:$0xff]
        %v989 = vld [vmem:[#allocation2 + $0x58] sm:$0xff]
        %v990 = vld [vmem:[#allocation2 + $0x60] sm:$0xff]
        %v991 = vld [vmem:[#allocation2 + $0x68] sm:$0xff]
        %v992 = vld [vmem:[#allocation2 + $0x70] sm:$0xff]
        %v993 = vld [vmem:[#allocation2 + $0x78] sm:$0xff]
        %994 = vst [vmem:[%s417] sm:$0xff] %v978
        %995 = vst [vmem:[%s417 + $0x8] sm:$0xff] %v979
        %996 = vst [vmem:[%s417 + $0x10] sm:$0xff] %v980
        %997 = vst [vmem:[%s417 + $0x18] sm:$0xff] %v981
        %998 = vst [vmem:[%s417 + $0x20] sm:$0xff] %v982
        %999 = vst [vmem:[%s417 + $0x28] sm:$0xff] %v983
        %1000 = vst [vmem:[%s417 + $0x30] sm:$0xff] %v984
        %1001 = vst [vmem:[%s417 + $0x38] sm:$0xff] %v985
        %1002 = vst [vmem:[%s417 + $0x40] sm:$0xff] %v986
        %1003 = vst [vmem:[%s417 + $0x48] sm:$0xff] %v987
        %1004 = vst [vmem:[%s417 + $0x50] sm:$0xff] %v988
        %1005 = vst [vmem:[%s417 + $0x58] sm:$0xff] %v989
        %1006 = vst [vmem:[%s417 + $0x60] sm:$0xff] %v990
        %1007 = vst [vmem:[%s417 + $0x68] sm:$0xff] %v991
        %1008 = vst [vmem:[%s417 + $0x70] sm:$0xff] %v992
        %1009 = vst [vmem:[%s417 + $0x78] sm:$0xff] %v993
      $region60: #{rgin_conv.3} parent=51 // pred_fallthru
        _
      %s1010 = smul.u32 16, %s23
      %p1011 = scmp.lt.s32.totalorder %s1010, 15
      %s1012 = scalar_select %p1011, %s1010, 15
      %s1013 = smul.addr %s1012, 8
      %s1014 = scalar_lea.vmem %s8, %s1013
      // Predicated region
      $region61: #{rgin_conv.3} parent=51 // pred_check
        %p1015 = pneg %p249
      $region62: #{rgin_conv.3} parent=51 // pred_check_branch
        %1017 = sbr.rel (%p1015) target = $region64
      $region63: #{rgin_conv.3} parent=51 // pred_region
        %s1018 = smul.u32 16, %s23
      $region64: #{rgin_conv.3} parent=51 // pred_fallthru
        _
      // Predicated region
      $region65: #{rgin_conv.3} parent=51 // pred_check
        %p1019 = pneg %p249
      $region66: #{rgin_conv.3} parent=51 // pred_check_branch
        %1021 = sbr.rel (%p1019) target = $region68
      $region67: #{rgin_conv.3} parent=51 // pred_region
        %s1022 = smul.u32 16, %s23
        %p1023 = scmp.lt.s32.totalorder %s1022, 15
        %s1024 = scalar_select %p1023, %s1022, 15
        %s1025 = smul.addr %s1024, 8
        %s1026 = scalar_lea.vmem %s8, %s1025
      $region68: #{rgin_conv.3} parent=51 // pred_fallthru
        _
    $region52: #{rgin_conv.3} parent=5 // pred_fallthru
      _
    %p1027 = scmp.le.s32.totalorder 2, %s14
    // Predicated region
    $region69: #{rgin_conv.3} parent=5 // pred_check
      %p1028 = pneg %p1027
    $region70: #{rgin_conv.3} parent=5 // pred_check_branch
      %1030 = sbr.rel (%p1028) target = $region72
    $region71: #{rgin_conv.3} parent=5 // pred_region
      %s1031 = ssub.s32 %s14, 2
    $region72: #{rgin_conv.3} parent=5 // pred_fallthru
      _
  $region6: #{rgin_conv.3} parent=0 // loop_footer
    %s18 = sadd.s32 1, %s14
  $region7: #{rgin_conv.3} parent=0 // loop_footer_branch
    %13 = sbr.rel target = $region3
  $region8: #{rgin_conv.3} parent=0 // loop_exit
    _

</llo_original>
